<compile_context>
chip_gen: v5e
topology: v5e:2x2
jax: 0.10.0
libtpu: 0.0.40
codegen_flags: <defaults>
</compile_context>

<pallas_src>
import jax
import jax.numpy as jnp
from jax.experimental import pallas as pl
from jax.experimental.pallas import tpu as pltpu


# --------------------------------------------------------------------------- #
# Fused whole-network Pallas kernel (one batch element per grid step)
# --------------------------------------------------------------------------- #
def _make_fused_tcn_kernel(block_meta, L, k):
    """block_meta: tuple of (c_in, c_out, dilation, has_downsample) per TemporalBlock."""

    def kernel(*refs):
        # refs layout:
        #   x_ref, [w1t, b1, w2t, b2, (wd, bd)?] per block, dec_w, dec_b, emb_ref, y_ref
        shift_cache = {}  # python-level memoization: build each shift matrix once per trace

        def right_shift_mat(s):
            # R_s with R_s[u, t] = 1 iff t - u == s, so (x @ R_s)[c, t] == x[c, t - s]
            # (zero for t < s)  ==  causal left-zero-pad + dilated shift along time.
            if s not in shift_cache:
                row = jax.lax.broadcasted_iota(jnp.int32, (L, L), 0)
                col = jax.lax.broadcasted_iota(jnp.int32, (L, L), 1)
                shift_cache[s] = jnp.where(col - row == s, 1.0, 0.0).astype(jnp.float32)
            return shift_cache[s]

        x_ref = refs[0]
        idx = 1
        h = x_ref[0]                                       # (C_in, L), channels-first

        def conv(x, wt_ref, b_ref, d):
            # Causal dilated conv -> bias -> ReLU.  Dropout(0.2) = identity (eval mode).
            # out[o, t] = sum_j sum_c wt[j, o, c] * x[c, t - (k-1-j)*d]
            acc = jnp.dot(wt_ref[k - 1], x,
                          preferred_element_type=jnp.float32)          # tap with shift 0
            for j in range(k - 1):
                s = (k - 1 - j) * d
                xs = jnp.dot(x, right_shift_mat(s),
                             preferred_element_type=jnp.float32)       # shifted input (MXU)
                acc = acc + jnp.dot(wt_ref[j], xs,
                                    preferred_element_type=jnp.float32)
            return jnp.maximum(acc + b_ref[...], 0.0)

        for (_c_in, _c_out, d, has_ds) in block_meta:
            w1t, b1, w2t, b2 = refs[idx:idx + 4]
            idx += 4
            if has_ds:
                wd, bd = refs[idx:idx + 2]
                idx += 2
                res = jnp.dot(wd[...], h,
                              preferred_element_type=jnp.float32) + bd[...]   # 1x1 conv
            else:
                res = h                                    # identity residual, stays in VMEM
            y1 = conv(h, w1t, b1, d)
            y2 = conv(y1, w2t, b2, d)
            h = jnp.maximum(y2 + res, 0.0)                 # relu(out + res)

        dec_w_ref, dec_b_ref = refs[idx:idx + 2]
        emb_ref, y_ref = refs[idx + 2:idx + 4]

        # emb is already in PyTorch (C_last, L) layout — store directly, no transpose.
        emb_ref[0] = h.astype(emb_ref.dtype)
        # decoder: y[c, o] = sum_l emb[c, l] * W^T[l, o] + b[o]   (contracts the time axis)
        y = jnp.dot(h, dec_w_ref[...], preferred_element_type=jnp.float32) + dec_b_ref[...]
        y_ref[0] = y.astype(y_ref.dtype)

    return kernel


# --------------------------------------------------------------------------- #
# TCNModel forward — one pallas_call for the whole network
# --------------------------------------------------------------------------- #
def tcn_model_forward(params, inputs):
    """inputs: (N, C_in, L) PyTorch layout. Returns (emb, y) in PyTorch layout."""
    n, c_in, L = inputs.shape
    blocks = params["blocks"]
    k = blocks[0]["w1t"].shape[0]
    c_last = blocks[-1]["w2t"].shape[1]
    out_size = params["dec_w"].shape[1]
    # decoder nn.Linear(num_channels[-1], output_size) contracts emb's last (time) axis
    assert params["dec_w"].shape[0] == L, "decoder requires L == num_channels[-1]"

    def whole(shape):                                      # grid-invariant (weight) spec
        nd = len(shape)
        return pl.BlockSpec(shape, lambda i, _nd=nd: (0,) * _nd)

    args = [inputs]
    in_specs = [pl.BlockSpec((1, c_in, L), lambda i: (i, 0, 0))]
    block_meta = []
    for blk in blocks:
        c_o, c_i = blk["w1t"].shape[1], blk["w1t"].shape[2]
        has_ds = blk["wd"] is not None
        block_meta.append((c_i, c_o, blk["dilation"], has_ds))
        names = ["w1t", "b1", "w2t", "b2"] + (["wd", "bd"] if has_ds else [])
        for name in names:
            args.append(blk[name])
            in_specs.append(whole(blk[name].shape))
    for name in ("dec_w", "dec_b"):
        args.append(params[name])
        in_specs.append(whole(params[name].shape))

    kernel = _make_fused_tcn_kernel(tuple(block_meta), L, k)

    emb, y = pl.pallas_call(
        kernel,
        out_shape=(jax.ShapeDtypeStruct((n, c_last, L), jnp.float32),
                   jax.ShapeDtypeStruct((n, c_last, out_size), jnp.float32)),
        grid=(n,),                                         # batch axis; parallel -> both TCs on v7x
        in_specs=in_specs,
        out_specs=(pl.BlockSpec((1, c_last, L), lambda i: (i, 0, 0)),
                   pl.BlockSpec((1, c_last, out_size), lambda i: (i, 0, 0))),
        compiler_params=pltpu.CompilerParams(
            dimension_semantics=("parallel",)),
    )(*args)
    return emb, y


# --------------------------------------------------------------------------- #
# Parameters (deterministic, synthetic; weight_norm folded into effective weights)
# --------------------------------------------------------------------------- #
def init_params(key, input_size, output_size, num_channels, kernel_size):
    params = {"blocks": []}
    keys = jax.random.split(key, len(num_channels) * 6 + 2)
    kit = iter(keys)
    for i, c_out in enumerate(num_channels):
        c_in = input_size if i == 0 else num_channels[i - 1]
        blk = {
            "dilation": 2 ** i,
            # conv weights ~ N(0, 0.01) (as in init_weights); stored pre-transposed
            # channels-first: (k, Cout, Cin) so every in-kernel dot is a plain matmul.
            "w1t": 0.01 * jax.random.normal(next(kit), (kernel_size, c_out, c_in), jnp.float32),
            "b1":  0.01 * jax.random.normal(next(kit), (c_out, 1), jnp.float32),
            "w2t": 0.01 * jax.random.normal(next(kit), (kernel_size, c_out, c_out), jnp.float32),
            "b2":  0.01 * jax.random.normal(next(kit), (c_out, 1), jnp.float32),
        }
        if c_in != c_out:  # 1x1 downsample conv on the residual path
            blk["wd"] = 0.01 * jax.random.normal(next(kit), (c_out, c_in), jnp.float32)
            blk["bd"] = 0.01 * jax.random.normal(next(kit), (c_out, 1), jnp.float32)
        else:
            _ = next(kit); _ = next(kit)
            blk["wd"] = None
            blk["bd"] = None
        params["blocks"].append(blk)

    c_last = num_channels[-1]
    # decoder nn.Linear(num_channels[-1], output_size): store W^T as (L == C_last, out)
    params["dec_w"] = 0.05 * jax.random.normal(next(kit), (c_last, output_size), jnp.float32)
    params["dec_b"] = 0.05 * jax.random.normal(next(kit), (1, output_size), jnp.float32)
    return params


# --------------------------------------------------------------------------- #
# Pure-JAX reference (same math, no Pallas) for validation
# --------------------------------------------------------------------------- #
def ref_forward(params, inputs):
    h = inputs                                             # (N, C, L) channels-first
    for blk in params["blocks"]:
        d = blk["dilation"]
        k = blk["w1t"].shape[0]

        def conv(x, wt, b):
            pad = (k - 1) * d
            xp = jnp.pad(x, ((0, 0), (0, 0), (pad, 0)))    # causal left zero-pad
            length = x.shape[-1]
            acc = sum(jnp.einsum("oc,ncl->nol", wt[j], xp[:, :, j * d: j * d + length])
                      for j in range(k)) + b
            return jax.nn.relu(acc)

        res = h if blk["wd"] is None else jnp.einsum("oc,ncl->nol", blk["wd"], h) + blk["bd"]
        y1 = conv(h, blk["w1t"], blk["b1"])
        h = jax.nn.relu(conv(y1, blk["w2t"], blk["b2"]) + res)
    emb = h
    y = jnp.einsum("ncl,lo->nco", emb, params["dec_w"]) + params["dec_b"]
    return emb, y


# --------------------------------------------------------------------------- #
if __name__ == "__main__":
    N = 2
    input_size = 4
    num_channels = [8, 8, 16]   # middle block exercises the identity-residual path
    kernel_size = 2
    L = 16                      # must equal num_channels[-1] (see decoder note above)
    output_size = 8

    key = jax.random.PRNGKey(0)
    kx, kp = jax.random.split(key)
    inputs = jax.random.normal(kx, (N, input_size, L), jnp.float32)
    params = init_params(kp, input_size, output_size, num_channels, kernel_size)

    emb, y = tcn_model_forward(params, inputs)
    jax.block_until_ready((emb, y))

    emb_ref, y_ref = ref_forward(params, inputs)
    assert emb.shape == (N, num_channels[-1], L)
    assert y.shape == (N, num_channels[-1], output_size)
    assert jnp.allclose(emb, emb_ref, atol=1e-5, rtol=1e-5)
    assert jnp.allclose(y, y_ref, atol=1e-5, rtol=1e-5)

    print("KERNEL_OK")
</pallas_src>

<mosaic_0001>
module attributes {stable_mosaic.version = 11 : i64} {
  func.func @kernel(%arg0: i32, %arg1: memref<1x4x16xf32, #tpu.memory_space<vmem>>, %arg2: memref<2x8x4xf32, #tpu.memory_space<vmem>>, %arg3: memref<8x1xf32, #tpu.memory_space<vmem>>, %arg4: memref<2x8x8xf32, #tpu.memory_space<vmem>>, %arg5: memref<8x1xf32, #tpu.memory_space<vmem>>, %arg6: memref<8x4xf32, #tpu.memory_space<vmem>>, %arg7: memref<8x1xf32, #tpu.memory_space<vmem>>, %arg8: memref<2x8x8xf32, #tpu.memory_space<vmem>>, %arg9: memref<8x1xf32, #tpu.memory_space<vmem>>, %arg10: memref<2x8x8xf32, #tpu.memory_space<vmem>>, %arg11: memref<8x1xf32, #tpu.memory_space<vmem>>, %arg12: memref<2x16x8xf32, #tpu.memory_space<vmem>>, %arg13: memref<16x1xf32, #tpu.memory_space<vmem>>, %arg14: memref<2x16x16xf32, #tpu.memory_space<vmem>>, %arg15: memref<16x1xf32, #tpu.memory_space<vmem>>, %arg16: memref<16x8xf32, #tpu.memory_space<vmem>>, %arg17: memref<16x1xf32, #tpu.memory_space<vmem>>, %arg18: memref<16x8xf32, #tpu.memory_space<vmem>>, %arg19: memref<1x8xf32, #tpu.memory_space<vmem>>, %arg20: memref<1x16x16xf32, #tpu.memory_space<vmem>>, %arg21: memref<1x16x8xf32, #tpu.memory_space<vmem>>) attributes {dimension_semantics = [#tpu.dimension_semantics<parallel>], iteration_bounds = array<i64: 2>, scalar_prefetch = 0 : i64, scratch_operands = 0 : i64, tpu.core_type = #tpu.core_type<tc>, window_params = [{transform_indices = @transform_0, window_bounds = array<i64: 1, 4, 16>}, {pipeline_mode = #tpu.pipeline_mode<synchronous>, transform_indices = @transform_1, window_bounds = array<i64: 2, 8, 4>}, {pipeline_mode = #tpu.pipeline_mode<synchronous>, transform_indices = @transform_2, window_bounds = array<i64: 8, 1>}, {pipeline_mode = #tpu.pipeline_mode<synchronous>, transform_indices = @transform_3, window_bounds = array<i64: 2, 8, 8>}, {pipeline_mode = #tpu.pipeline_mode<synchronous>, transform_indices = @transform_4, window_bounds = array<i64: 8, 1>}, {pipeline_mode = #tpu.pipeline_mode<synchronous>, transform_indices = @transform_5, window_bounds = array<i64: 8, 4>}, {pipeline_mode = #tpu.pipeline_mode<synchronous>, transform_indices = @transform_6, window_bounds = array<i64: 8, 1>}, {pipeline_mode = #tpu.pipeline_mode<synchronous>, transform_indices = @transform_7, window_bounds = array<i64: 2, 8, 8>}, {pipeline_mode = #tpu.pipeline_mode<synchronous>, transform_indices = @transform_8, window_bounds = array<i64: 8, 1>}, {pipeline_mode = #tpu.pipeline_mode<synchronous>, transform_indices = @transform_9, window_bounds = array<i64: 2, 8, 8>}, {pipeline_mode = #tpu.pipeline_mode<synchronous>, transform_indices = @transform_10, window_bounds = array<i64: 8, 1>}, {pipeline_mode = #tpu.pipeline_mode<synchronous>, transform_indices = @transform_11, window_bounds = array<i64: 2, 16, 8>}, {pipeline_mode = #tpu.pipeline_mode<synchronous>, transform_indices = @transform_12, window_bounds = array<i64: 16, 1>}, {pipeline_mode = #tpu.pipeline_mode<synchronous>, transform_indices = @transform_13, window_bounds = array<i64: 2, 16, 16>}, {pipeline_mode = #tpu.pipeline_mode<synchronous>, transform_indices = @transform_14, window_bounds = array<i64: 16, 1>}, {pipeline_mode = #tpu.pipeline_mode<synchronous>, transform_indices = @transform_15, window_bounds = array<i64: 16, 8>}, {pipeline_mode = #tpu.pipeline_mode<synchronous>, transform_indices = @transform_16, window_bounds = array<i64: 16, 1>}, {pipeline_mode = #tpu.pipeline_mode<synchronous>, transform_indices = @transform_17, window_bounds = array<i64: 16, 8>}, {pipeline_mode = #tpu.pipeline_mode<synchronous>, transform_indices = @transform_18, window_bounds = array<i64: 1, 8>}, {transform_indices = @transform_19, window_bounds = array<i64: 1, 16, 16>}, {transform_indices = @transform_20, window_bounds = array<i64: 1, 16, 8>}]} {
    %c0 = arith.constant 0 : index
    %c0_0 = arith.constant 0 : index
    %c0_1 = arith.constant 0 : index
    %0 = vector.load %arg1[%c0, %c0_0, %c0_1] : memref<1x4x16xf32, #tpu.memory_space<vmem>>, vector<1x4x16xf32>
    %1 = vector.shape_cast %0 : vector<1x4x16xf32> to vector<4x16xf32>
    %c0_2 = arith.constant 0 : index
    %c0_3 = arith.constant 0 : index
    %2 = vector.load %arg6[%c0_2, %c0_3] : memref<8x4xf32, #tpu.memory_space<vmem>>, vector<8x4xf32>
    %cst = arith.constant dense<0.000000e+00> : vector<8x16xf32>
    %3 = tpu.matmul %2, %1, %cst {dimension_numbers = #tpu.dot_dimension_numbers<[1], [0], [0], [1], [0, 0, 1, 1], [], []>} : vector<8x4xf32>, vector<4x16xf32>, vector<8x16xf32> -> vector<8x16xf32>
    %c0_4 = arith.constant 0 : index
    %c0_5 = arith.constant 0 : index
    %4 = vector.load %arg7[%c0_4, %c0_5] : memref<8x1xf32, #tpu.memory_space<vmem>>, vector<8x1xf32>
    %5 = vector.broadcast %4 : vector<8x1xf32> to vector<8x16xf32>
    %6 = arith.addf %3, %5 : vector<8x16xf32>
    %c1 = arith.constant 1 : index
    %c0_6 = arith.constant 0 : index
    %c0_7 = arith.constant 0 : index
    %7 = vector.load %arg2[%c1, %c0_6, %c0_7] : memref<2x8x4xf32, #tpu.memory_space<vmem>>, vector<1x8x4xf32>
    %8 = vector.shape_cast %7 : vector<1x8x4xf32> to vector<8x4xf32>
    %cst_8 = arith.constant dense<0.000000e+00> : vector<8x16xf32>
    %9 = tpu.matmul %8, %1, %cst_8 {dimension_numbers = #tpu.dot_dimension_numbers<[1], [0], [0], [1], [0, 0, 1, 1], [], []>} : vector<8x4xf32>, vector<4x16xf32>, vector<8x16xf32> -> vector<8x16xf32>
    %10 = tpu.iota {dimensions = array<i32: 0>} : vector<16x16xi32>
    %11 = tpu.iota {dimensions = array<i32: 1>} : vector<16x16xi32>
    %12 = arith.subi %11, %10 : vector<16x16xi32>
    %c1_i32 = arith.constant 1 : i32
    %13 = vector.broadcast %c1_i32 : i32 to vector<16x16xi32>
    %14 = arith.cmpi eq, %12, %13 : vector<16x16xi32>
    %cst_9 = arith.constant 1.000000e+00 : f32
    %cst_10 = arith.constant 0.000000e+00 : f32
    %15 = vector.broadcast %cst_9 : f32 to vector<16x16xf32>
    %16 = vector.broadcast %cst_10 : f32 to vector<16x16xf32>
    %17 = arith.select %14, %15, %16 : vector<16x16xi1>, vector<16x16xf32>
    %cst_11 = arith.constant dense<0.000000e+00> : vector<4x16xf32>
    %18 = tpu.matmul %1, %17, %cst_11 {dimension_numbers = #tpu.dot_dimension_numbers<[1], [0], [0], [1], [0, 0, 1, 1], [], []>} : vector<4x16xf32>, vector<16x16xf32>, vector<4x16xf32> -> vector<4x16xf32>
    %c0_12 = arith.constant 0 : index
    %c0_13 = arith.constant 0 : index
    %c0_14 = arith.constant 0 : index
    %19 = vector.load %arg2[%c0_12, %c0_13, %c0_14] : memref<2x8x4xf32, #tpu.memory_space<vmem>>, vector<1x8x4xf32>
    %20 = vector.shape_cast %19 : vector<1x8x4xf32> to vector<8x4xf32>
    %cst_15 = arith.constant dense<0.000000e+00> : vector<8x16xf32>
    %21 = tpu.matmul %20, %18, %cst_15 {dimension_numbers = #tpu.dot_dimension_numbers<[1], [0], [0], [1], [0, 0, 1, 1], [], []>} : vector<8x4xf32>, vector<4x16xf32>, vector<8x16xf32> -> vector<8x16xf32>
    %22 = arith.addf %9, %21 : vector<8x16xf32>
    %c0_16 = arith.constant 0 : index
    %c0_17 = arith.constant 0 : index
    %23 = vector.load %arg3[%c0_16, %c0_17] : memref<8x1xf32, #tpu.memory_space<vmem>>, vector<8x1xf32>
    %24 = vector.broadcast %23 : vector<8x1xf32> to vector<8x16xf32>
    %25 = arith.addf %22, %24 : vector<8x16xf32>
    %cst_18 = arith.constant 0.000000e+00 : f32
    %26 = vector.broadcast %cst_18 : f32 to vector<8x16xf32>
    %27 = arith.maximumf %25, %26 : vector<8x16xf32>
    %c1_19 = arith.constant 1 : index
    %c0_20 = arith.constant 0 : index
    %c0_21 = arith.constant 0 : index
    %28 = vector.load %arg4[%c1_19, %c0_20, %c0_21] : memref<2x8x8xf32, #tpu.memory_space<vmem>>, vector<1x8x8xf32>
    %29 = vector.shape_cast %28 : vector<1x8x8xf32> to vector<8x8xf32>
    %cst_22 = arith.constant dense<0.000000e+00> : vector<8x16xf32>
    %30 = tpu.matmul %29, %27, %cst_22 {dimension_numbers = #tpu.dot_dimension_numbers<[1], [0], [0], [1], [0, 0, 1, 1], [], []>} : vector<8x8xf32>, vector<8x16xf32>, vector<8x16xf32> -> vector<8x16xf32>
    %cst_23 = arith.constant dense<0.000000e+00> : vector<8x16xf32>
    %31 = tpu.matmul %27, %17, %cst_23 {dimension_numbers = #tpu.dot_dimension_numbers<[1], [0], [0], [1], [0, 0, 1, 1], [], []>} : vector<8x16xf32>, vector<16x16xf32>, vector<8x16xf32> -> vector<8x16xf32>
    %c0_24 = arith.constant 0 : index
    %c0_25 = arith.constant 0 : index
    %c0_26 = arith.constant 0 : index
    %32 = vector.load %arg4[%c0_24, %c0_25, %c0_26] : memref<2x8x8xf32, #tpu.memory_space<vmem>>, vector<1x8x8xf32>
    %33 = vector.shape_cast %32 : vector<1x8x8xf32> to vector<8x8xf32>
    %cst_27 = arith.constant dense<0.000000e+00> : vector<8x16xf32>
    %34 = tpu.matmul %33, %31, %cst_27 {dimension_numbers = #tpu.dot_dimension_numbers<[1], [0], [0], [1], [0, 0, 1, 1], [], []>} : vector<8x8xf32>, vector<8x16xf32>, vector<8x16xf32> -> vector<8x16xf32>
    %35 = arith.addf %30, %34 : vector<8x16xf32>
    %c0_28 = arith.constant 0 : index
    %c0_29 = arith.constant 0 : index
    %36 = vector.load %arg5[%c0_28, %c0_29] : memref<8x1xf32, #tpu.memory_space<vmem>>, vector<8x1xf32>
    %37 = vector.broadcast %36 : vector<8x1xf32> to vector<8x16xf32>
    %38 = arith.addf %35, %37 : vector<8x16xf32>
    %cst_30 = arith.constant 0.000000e+00 : f32
    %39 = vector.broadcast %cst_30 : f32 to vector<8x16xf32>
    %40 = arith.maximumf %38, %39 : vector<8x16xf32>
    %41 = arith.addf %40, %6 : vector<8x16xf32>
    %cst_31 = arith.constant 0.000000e+00 : f32
    %42 = vector.broadcast %cst_31 : f32 to vector<8x16xf32>
    %43 = arith.maximumf %41, %42 : vector<8x16xf32>
    %c1_32 = arith.constant 1 : index
    %c0_33 = arith.constant 0 : index
    %c0_34 = arith.constant 0 : index
    %44 = vector.load %arg8[%c1_32, %c0_33, %c0_34] : memref<2x8x8xf32, #tpu.memory_space<vmem>>, vector<1x8x8xf32>
    %45 = vector.shape_cast %44 : vector<1x8x8xf32> to vector<8x8xf32>
    %cst_35 = arith.constant dense<0.000000e+00> : vector<8x16xf32>
    %46 = tpu.matmul %45, %43, %cst_35 {dimension_numbers = #tpu.dot_dimension_numbers<[1], [0], [0], [1], [0, 0, 1, 1], [], []>} : vector<8x8xf32>, vector<8x16xf32>, vector<8x16xf32> -> vector<8x16xf32>
    %47 = tpu.iota {dimensions = array<i32: 0>} : vector<16x16xi32>
    %48 = tpu.iota {dimensions = array<i32: 1>} : vector<16x16xi32>
    %49 = arith.subi %48, %47 : vector<16x16xi32>
    %c2_i32 = arith.constant 2 : i32
    %50 = vector.broadcast %c2_i32 : i32 to vector<16x16xi32>
    %51 = arith.cmpi eq, %49, %50 : vector<16x16xi32>
    %cst_36 = arith.constant 1.000000e+00 : f32
    %cst_37 = arith.constant 0.000000e+00 : f32
    %52 = vector.broadcast %cst_36 : f32 to vector<16x16xf32>
    %53 = vector.broadcast %cst_37 : f32 to vector<16x16xf32>
    %54 = arith.select %51, %52, %53 : vector<16x16xi1>, vector<16x16xf32>
    %cst_38 = arith.constant dense<0.000000e+00> : vector<8x16xf32>
    %55 = tpu.matmul %43, %54, %cst_38 {dimension_numbers = #tpu.dot_dimension_numbers<[1], [0], [0], [1], [0, 0, 1, 1], [], []>} : vector<8x16xf32>, vector<16x16xf32>, vector<8x16xf32> -> vector<8x16xf32>
    %c0_39 = arith.constant 0 : index
    %c0_40 = arith.constant 0 : index
    %c0_41 = arith.constant 0 : index
    %56 = vector.load %arg8[%c0_39, %c0_40, %c0_41] : memref<2x8x8xf32, #tpu.memory_space<vmem>>, vector<1x8x8xf32>
    %57 = vector.shape_cast %56 : vector<1x8x8xf32> to vector<8x8xf32>
    %cst_42 = arith.constant dense<0.000000e+00> : vector<8x16xf32>
    %58 = tpu.matmul %57, %55, %cst_42 {dimension_numbers = #tpu.dot_dimension_numbers<[1], [0], [0], [1], [0, 0, 1, 1], [], []>} : vector<8x8xf32>, vector<8x16xf32>, vector<8x16xf32> -> vector<8x16xf32>
    %59 = arith.addf %46, %58 : vector<8x16xf32>
    %c0_43 = arith.constant 0 : index
    %c0_44 = arith.constant 0 : index
    %60 = vector.load %arg9[%c0_43, %c0_44] : memref<8x1xf32, #tpu.memory_space<vmem>>, vector<8x1xf32>
    %61 = vector.broadcast %60 : vector<8x1xf32> to vector<8x16xf32>
    %62 = arith.addf %59, %61 : vector<8x16xf32>
    %cst_45 = arith.constant 0.000000e+00 : f32
    %63 = vector.broadcast %cst_45 : f32 to vector<8x16xf32>
    %64 = arith.maximumf %62, %63 : vector<8x16xf32>
    %c1_46 = arith.constant 1 : index
    %c0_47 = arith.constant 0 : index
    %c0_48 = arith.constant 0 : index
    %65 = vector.load %arg10[%c1_46, %c0_47, %c0_48] : memref<2x8x8xf32, #tpu.memory_space<vmem>>, vector<1x8x8xf32>
    %66 = vector.shape_cast %65 : vector<1x8x8xf32> to vector<8x8xf32>
    %cst_49 = arith.constant dense<0.000000e+00> : vector<8x16xf32>
    %67 = tpu.matmul %66, %64, %cst_49 {dimension_numbers = #tpu.dot_dimension_numbers<[1], [0], [0], [1], [0, 0, 1, 1], [], []>} : vector<8x8xf32>, vector<8x16xf32>, vector<8x16xf32> -> vector<8x16xf32>
    %cst_50 = arith.constant dense<0.000000e+00> : vector<8x16xf32>
    %68 = tpu.matmul %64, %54, %cst_50 {dimension_numbers = #tpu.dot_dimension_numbers<[1], [0], [0], [1], [0, 0, 1, 1], [], []>} : vector<8x16xf32>, vector<16x16xf32>, vector<8x16xf32> -> vector<8x16xf32>
    %c0_51 = arith.constant 0 : index
    %c0_52 = arith.constant 0 : index
    %c0_53 = arith.constant 0 : index
    %69 = vector.load %arg10[%c0_51, %c0_52, %c0_53] : memref<2x8x8xf32, #tpu.memory_space<vmem>>, vector<1x8x8xf32>
    %70 = vector.shape_cast %69 : vector<1x8x8xf32> to vector<8x8xf32>
    %cst_54 = arith.constant dense<0.000000e+00> : vector<8x16xf32>
    %71 = tpu.matmul %70, %68, %cst_54 {dimension_numbers = #tpu.dot_dimension_numbers<[1], [0], [0], [1], [0, 0, 1, 1], [], []>} : vector<8x8xf32>, vector<8x16xf32>, vector<8x16xf32> -> vector<8x16xf32>
    %72 = arith.addf %67, %71 : vector<8x16xf32>
    %c0_55 = arith.constant 0 : index
    %c0_56 = arith.constant 0 : index
    %73 = vector.load %arg11[%c0_55, %c0_56] : memref<8x1xf32, #tpu.memory_space<vmem>>, vector<8x1xf32>
    %74 = vector.broadcast %73 : vector<8x1xf32> to vector<8x16xf32>
    %75 = arith.addf %72, %74 : vector<8x16xf32>
    %cst_57 = arith.constant 0.000000e+00 : f32
    %76 = vector.broadcast %cst_57 : f32 to vector<8x16xf32>
    %77 = arith.maximumf %75, %76 : vector<8x16xf32>
    %78 = arith.addf %77, %43 : vector<8x16xf32>
    %cst_58 = arith.constant 0.000000e+00 : f32
    %79 = vector.broadcast %cst_58 : f32 to vector<8x16xf32>
    %80 = arith.maximumf %78, %79 : vector<8x16xf32>
    %c0_59 = arith.constant 0 : index
    %c0_60 = arith.constant 0 : index
    %81 = vector.load %arg16[%c0_59, %c0_60] : memref<16x8xf32, #tpu.memory_space<vmem>>, vector<16x8xf32>
    %cst_61 = arith.constant dense<0.000000e+00> : vector<16x16xf32>
    %82 = tpu.matmul %81, %80, %cst_61 {dimension_numbers = #tpu.dot_dimension_numbers<[1], [0], [0], [1], [0, 0, 1, 1], [], []>} : vector<16x8xf32>, vector<8x16xf32>, vector<16x16xf32> -> vector<16x16xf32>
    %c0_62 = arith.constant 0 : index
    %c0_63 = arith.constant 0 : index
    %83 = vector.load %arg17[%c0_62, %c0_63] : memref<16x1xf32, #tpu.memory_space<vmem>>, vector<16x1xf32>
    %84 = vector.broadcast %83 : vector<16x1xf32> to vector<16x16xf32>
    %85 = arith.addf %82, %84 : vector<16x16xf32>
    %c1_64 = arith.constant 1 : index
    %c0_65 = arith.constant 0 : index
    %c0_66 = arith.constant 0 : index
    %86 = vector.load %arg12[%c1_64, %c0_65, %c0_66] : memref<2x16x8xf32, #tpu.memory_space<vmem>>, vector<1x16x8xf32>
    %87 = vector.shape_cast %86 : vector<1x16x8xf32> to vector<16x8xf32>
    %cst_67 = arith.constant dense<0.000000e+00> : vector<16x16xf32>
    %88 = tpu.matmul %87, %80, %cst_67 {dimension_numbers = #tpu.dot_dimension_numbers<[1], [0], [0], [1], [0, 0, 1, 1], [], []>} : vector<16x8xf32>, vector<8x16xf32>, vector<16x16xf32> -> vector<16x16xf32>
    %89 = tpu.iota {dimensions = array<i32: 0>} : vector<16x16xi32>
    %90 = tpu.iota {dimensions = array<i32: 1>} : vector<16x16xi32>
    %91 = arith.subi %90, %89 : vector<16x16xi32>
    %c4_i32 = arith.constant 4 : i32
    %92 = vector.broadcast %c4_i32 : i32 to vector<16x16xi32>
    %93 = arith.cmpi eq, %91, %92 : vector<16x16xi32>
    %cst_68 = arith.constant 1.000000e+00 : f32
    %cst_69 = arith.constant 0.000000e+00 : f32
    %94 = vector.broadcast %cst_68 : f32 to vector<16x16xf32>
    %95 = vector.broadcast %cst_69 : f32 to vector<16x16xf32>
    %96 = arith.select %93, %94, %95 : vector<16x16xi1>, vector<16x16xf32>
    %cst_70 = arith.constant dense<0.000000e+00> : vector<8x16xf32>
    %97 = tpu.matmul %80, %96, %cst_70 {dimension_numbers = #tpu.dot_dimension_numbers<[1], [0], [0], [1], [0, 0, 1, 1], [], []>} : vector<8x16xf32>, vector<16x16xf32>, vector<8x16xf32> -> vector<8x16xf32>
    %c0_71 = arith.constant 0 : index
    %c0_72 = arith.constant 0 : index
    %c0_73 = arith.constant 0 : index
    %98 = vector.load %arg12[%c0_71, %c0_72, %c0_73] : memref<2x16x8xf32, #tpu.memory_space<vmem>>, vector<1x16x8xf32>
    %99 = vector.shape_cast %98 : vector<1x16x8xf32> to vector<16x8xf32>
    %cst_74 = arith.constant dense<0.000000e+00> : vector<16x16xf32>
    %100 = tpu.matmul %99, %97, %cst_74 {dimension_numbers = #tpu.dot_dimension_numbers<[1], [0], [0], [1], [0, 0, 1, 1], [], []>} : vector<16x8xf32>, vector<8x16xf32>, vector<16x16xf32> -> vector<16x16xf32>
    %101 = arith.addf %88, %100 : vector<16x16xf32>
    %c0_75 = arith.constant 0 : index
    %c0_76 = arith.constant 0 : index
    %102 = vector.load %arg13[%c0_75, %c0_76] : memref<16x1xf32, #tpu.memory_space<vmem>>, vector<16x1xf32>
    %103 = vector.broadcast %102 : vector<16x1xf32> to vector<16x16xf32>
    %104 = arith.addf %101, %103 : vector<16x16xf32>
    %cst_77 = arith.constant 0.000000e+00 : f32
    %105 = vector.broadcast %cst_77 : f32 to vector<16x16xf32>
    %106 = arith.maximumf %104, %105 : vector<16x16xf32>
    %c1_78 = arith.constant 1 : index
    %c0_79 = arith.constant 0 : index
    %c0_80 = arith.constant 0 : index
    %107 = vector.load %arg14[%c1_78, %c0_79, %c0_80] : memref<2x16x16xf32, #tpu.memory_space<vmem>>, vector<1x16x16xf32>
    %108 = vector.shape_cast %107 : vector<1x16x16xf32> to vector<16x16xf32>
    %cst_81 = arith.constant dense<0.000000e+00> : vector<16x16xf32>
    %109 = tpu.matmul %108, %106, %cst_81 {dimension_numbers = #tpu.dot_dimension_numbers<[1], [0], [0], [1], [0, 0, 1, 1], [], []>} : vector<16x16xf32>, vector<16x16xf32>, vector<16x16xf32> -> vector<16x16xf32>
    %cst_82 = arith.constant dense<0.000000e+00> : vector<16x16xf32>
    %110 = tpu.matmul %106, %96, %cst_82 {dimension_numbers = #tpu.dot_dimension_numbers<[1], [0], [0], [1], [0, 0, 1, 1], [], []>} : vector<16x16xf32>, vector<16x16xf32>, vector<16x16xf32> -> vector<16x16xf32>
    %c0_83 = arith.constant 0 : index
    %c0_84 = arith.constant 0 : index
    %c0_85 = arith.constant 0 : index
    %111 = vector.load %arg14[%c0_83, %c0_84, %c0_85] : memref<2x16x16xf32, #tpu.memory_space<vmem>>, vector<1x16x16xf32>
    %112 = vector.shape_cast %111 : vector<1x16x16xf32> to vector<16x16xf32>
    %cst_86 = arith.constant dense<0.000000e+00> : vector<16x16xf32>
    %113 = tpu.matmul %112, %110, %cst_86 {dimension_numbers = #tpu.dot_dimension_numbers<[1], [0], [0], [1], [0, 0, 1, 1], [], []>} : vector<16x16xf32>, vector<16x16xf32>, vector<16x16xf32> -> vector<16x16xf32>
    %114 = arith.addf %109, %113 : vector<16x16xf32>
    %c0_87 = arith.constant 0 : index
    %c0_88 = arith.constant 0 : index
    %115 = vector.load %arg15[%c0_87, %c0_88] : memref<16x1xf32, #tpu.memory_space<vmem>>, vector<16x1xf32>
    %116 = vector.broadcast %115 : vector<16x1xf32> to vector<16x16xf32>
    %117 = arith.addf %114, %116 : vector<16x16xf32>
    %cst_89 = arith.constant 0.000000e+00 : f32
    %118 = vector.broadcast %cst_89 : f32 to vector<16x16xf32>
    %119 = arith.maximumf %117, %118 : vector<16x16xf32>
    %120 = arith.addf %119, %85 : vector<16x16xf32>
    %cst_90 = arith.constant 0.000000e+00 : f32
    %121 = vector.broadcast %cst_90 : f32 to vector<16x16xf32>
    %122 = arith.maximumf %120, %121 : vector<16x16xf32>
    %c0_91 = arith.constant 0 : index
    %c0_92 = arith.constant 0 : index
    %c0_93 = arith.constant 0 : index
    %123 = vector.load %arg20[%c0_91, %c0_92, %c0_93] : memref<1x16x16xf32, #tpu.memory_space<vmem>>, vector<1x16x16xf32>
    %124 = vector.shape_cast %123 : vector<1x16x16xf32> to vector<16x16xf32>
    %125 = vector.shape_cast %122 : vector<16x16xf32> to vector<1x16x16xf32>
    tpu.vector_store %arg20[%c0_91, %c0_92, %c0_93], %125 {strides = array<i32>} : memref<1x16x16xf32, #tpu.memory_space<vmem>>, vector<1x16x16xf32>,
    %c0_94 = arith.constant 0 : index
    %c0_95 = arith.constant 0 : index
    %126 = vector.load %arg18[%c0_94, %c0_95] : memref<16x8xf32, #tpu.memory_space<vmem>>, vector<16x8xf32>
    %cst_96 = arith.constant dense<0.000000e+00> : vector<16x8xf32>
    %127 = tpu.matmul %122, %126, %cst_96 {dimension_numbers = #tpu.dot_dimension_numbers<[1], [0], [0], [1], [0, 0, 1, 1], [], []>} : vector<16x16xf32>, vector<16x8xf32>, vector<16x8xf32> -> vector<16x8xf32>
    %c0_97 = arith.constant 0 : index
    %c0_98 = arith.constant 0 : index
    %128 = vector.load %arg19[%c0_97, %c0_98] : memref<1x8xf32, #tpu.memory_space<vmem>>, vector<1x8xf32>
    %129 = vector.broadcast %128 : vector<1x8xf32> to vector<16x8xf32>
    %130 = arith.addf %127, %129 : vector<16x8xf32>
    %c0_99 = arith.constant 0 : index
    %c0_100 = arith.constant 0 : index
    %c0_101 = arith.constant 0 : index
    %131 = vector.load %arg21[%c0_99, %c0_100, %c0_101] : memref<1x16x8xf32, #tpu.memory_space<vmem>>, vector<1x16x8xf32>
    %132 = vector.shape_cast %131 : vector<1x16x8xf32> to vector<16x8xf32>
    %133 = vector.shape_cast %130 : vector<16x8xf32> to vector<1x16x8xf32>
    tpu.vector_store %arg21[%c0_99, %c0_100, %c0_101], %133 {strides = array<i32>} : memref<1x16x8xf32, #tpu.memory_space<vmem>>, vector<1x16x8xf32>,
    return
  }
  func.func @transform_0(%arg0: i32) -> (i32, i32, i32) {
    %c0_i32 = arith.constant 0 : i32
    %c0_i32_0 = arith.constant 0 : i32
    %c0_i32_1 = arith.constant 0 : i32
    return %arg0, %c0_i32, %c0_i32_0 : i32, i32, i32
  }
  func.func @transform_1(%arg0: i32) -> (i32, i32, i32) {
    %c0_i32 = arith.constant 0 : i32
    %c0_i32_0 = arith.constant 0 : i32
    %c0_i32_1 = arith.constant 0 : i32
    %c0_i32_2 = arith.constant 0 : i32
    return %c0_i32, %c0_i32_0, %c0_i32_1 : i32, i32, i32
  }
  func.func @transform_2(%arg0: i32) -> (i32, i32) {
    %c0_i32 = arith.constant 0 : i32
    %c0_i32_0 = arith.constant 0 : i32
    %c0_i32_1 = arith.constant 0 : i32
    return %c0_i32, %c0_i32_0 : i32, i32
  }
  func.func @transform_3(%arg0: i32) -> (i32, i32, i32) {
    %c0_i32 = arith.constant 0 : i32
    %c0_i32_0 = arith.constant 0 : i32
    %c0_i32_1 = arith.constant 0 : i32
    %c0_i32_2 = arith.constant 0 : i32
    return %c0_i32, %c0_i32_0, %c0_i32_1 : i32, i32, i32
  }
  func.func @transform_4(%arg0: i32) -> (i32, i32) {
    %c0_i32 = arith.constant 0 : i32
    %c0_i32_0 = arith.constant 0 : i32
    %c0_i32_1 = arith.constant 0 : i32
    return %c0_i32, %c0_i32_0 : i32, i32
  }
  func.func @transform_5(%arg0: i32) -> (i32, i32) {
    %c0_i32 = arith.constant 0 : i32
    %c0_i32_0 = arith.constant 0 : i32
    %c0_i32_1 = arith.constant 0 : i32
    return %c0_i32, %c0_i32_0 : i32, i32
  }
  func.func @transform_6(%arg0: i32) -> (i32, i32) {
    %c0_i32 = arith.constant 0 : i32
    %c0_i32_0 = arith.constant 0 : i32
    %c0_i32_1 = arith.constant 0 : i32
    return %c0_i32, %c0_i32_0 : i32, i32
  }
  func.func @transform_7(%arg0: i32) -> (i32, i32, i32) {
    %c0_i32 = arith.constant 0 : i32
    %c0_i32_0 = arith.constant 0 : i32
    %c0_i32_1 = arith.constant 0 : i32
    %c0_i32_2 = arith.constant 0 : i32
    return %c0_i32, %c0_i32_0, %c0_i32_1 : i32, i32, i32
  }
  func.func @transform_8(%arg0: i32) -> (i32, i32) {
    %c0_i32 = arith.constant 0 : i32
    %c0_i32_0 = arith.constant 0 : i32
    %c0_i32_1 = arith.constant 0 : i32
    return %c0_i32, %c0_i32_0 : i32, i32
  }
  func.func @transform_9(%arg0: i32) -> (i32, i32, i32) {
    %c0_i32 = arith.constant 0 : i32
    %c0_i32_0 = arith.constant 0 : i32
    %c0_i32_1 = arith.constant 0 : i32
    %c0_i32_2 = arith.constant 0 : i32
    return %c0_i32, %c0_i32_0, %c0_i32_1 : i32, i32, i32
  }
  func.func @transform_10(%arg0: i32) -> (i32, i32) {
    %c0_i32 = arith.constant 0 : i32
    %c0_i32_0 = arith.constant 0 : i32
    %c0_i32_1 = arith.constant 0 : i32
    return %c0_i32, %c0_i32_0 : i32, i32
  }
  func.func @transform_11(%arg0: i32) -> (i32, i32, i32) {
    %c0_i32 = arith.constant 0 : i32
    %c0_i32_0 = arith.constant 0 : i32
    %c0_i32_1 = arith.constant 0 : i32
    %c0_i32_2 = arith.constant 0 : i32
    return %c0_i32, %c0_i32_0, %c0_i32_1 : i32, i32, i32
  }
  func.func @transform_12(%arg0: i32) -> (i32, i32) {
    %c0_i32 = arith.constant 0 : i32
    %c0_i32_0 = arith.constant 0 : i32
    %c0_i32_1 = arith.constant 0 : i32
    return %c0_i32, %c0_i32_0 : i32, i32
  }
  func.func @transform_13(%arg0: i32) -> (i32, i32, i32) {
    %c0_i32 = arith.constant 0 : i32
    %c0_i32_0 = arith.constant 0 : i32
    %c0_i32_1 = arith.constant 0 : i32
    %c0_i32_2 = arith.constant 0 : i32
    return %c0_i32, %c0_i32_0, %c0_i32_1 : i32, i32, i32
  }
  func.func @transform_14(%arg0: i32) -> (i32, i32) {
    %c0_i32 = arith.constant 0 : i32
    %c0_i32_0 = arith.constant 0 : i32
    %c0_i32_1 = arith.constant 0 : i32
    return %c0_i32, %c0_i32_0 : i32, i32
  }
  func.func @transform_15(%arg0: i32) -> (i32, i32) {
    %c0_i32 = arith.constant 0 : i32
    %c0_i32_0 = arith.constant 0 : i32
    %c0_i32_1 = arith.constant 0 : i32
    return %c0_i32, %c0_i32_0 : i32, i32
  }
  func.func @transform_16(%arg0: i32) -> (i32, i32) {
    %c0_i32 = arith.constant 0 : i32
    %c0_i32_0 = arith.constant 0 : i32
    %c0_i32_1 = arith.constant 0 : i32
    return %c0_i32, %c0_i32_0 : i32, i32
  }
  func.func @transform_17(%arg0: i32) -> (i32, i32) {
    %c0_i32 = arith.constant 0 : i32
    %c0_i32_0 = arith.constant 0 : i32
    %c0_i32_1 = arith.constant 0 : i32
    return %c0_i32, %c0_i32_0 : i32, i32
  }
  func.func @transform_18(%arg0: i32) -> (i32, i32) {
    %c0_i32 = arith.constant 0 : i32
    %c0_i32_0 = arith.constant 0 : i32
    %c0_i32_1 = arith.constant 0 : i32
    return %c0_i32, %c0_i32_0 : i32, i32
  }
  func.func @transform_19(%arg0: i32) -> (i32, i32, i32) {
    %c0_i32 = arith.constant 0 : i32
    %c0_i32_0 = arith.constant 0 : i32
    %c0_i32_1 = arith.constant 0 : i32
    return %arg0, %c0_i32, %c0_i32_0 : i32, i32, i32
  }
  func.func @transform_20(%arg0: i32) -> (i32, i32, i32) {
    %c0_i32 = arith.constant 0 : i32
    %c0_i32_0 = arith.constant 0 : i32
    %c0_i32_1 = arith.constant 0 : i32
    return %arg0, %c0_i32, %c0_i32_0 : i32, i32, i32
  }
}

</mosaic_0001>

<llo_original>
// kernel: tpu_custom_call.1
$region0: #{tpu_custom_call.1}
  #allocation0 [shape = 'u32[]', space=smem, size = 0x4, offset = 0x4, fixed_abs, tag = 'smem constant byte address 0x4 - core index']
  #allocation1 [shape = 'u32[72,128]{1,0:T(1,128)}', space=vmem, size = 0x9000, scoped, tag = 'internal scratch']
  %s0 = inlined_call_operand.vmem [shape: f32[2,4,16], index: 0, kind: input, shape index: {}]
  %s1 = inlined_call_operand.vmem [shape: f32[2,8,4], index: 1, kind: input, shape index: {}]
  %s2 = inlined_call_operand.vmem [shape: f32[8,1], index: 2, kind: input, shape index: {}]
  %s3 = inlined_call_operand.vmem [shape: f32[2,8,8], index: 3, kind: input, shape index: {}]
  %s4 = inlined_call_operand.vmem [shape: f32[8,1], index: 4, kind: input, shape index: {}]
  %s5 = inlined_call_operand.vmem [shape: f32[8,4], index: 5, kind: input, shape index: {}]
  %s6 = inlined_call_operand.vmem [shape: f32[8,1], index: 6, kind: input, shape index: {}]
  %s7 = inlined_call_operand.vmem [shape: f32[2,8,8], index: 7, kind: input, shape index: {}]
  %s8 = inlined_call_operand.vmem [shape: f32[8,1], index: 8, kind: input, shape index: {}]
  %s9 = inlined_call_operand.vmem [shape: f32[2,8,8], index: 9, kind: input, shape index: {}]
  %s10 = inlined_call_operand.vmem [shape: f32[8,1], index: 10, kind: input, shape index: {}]
  %s11 = inlined_call_operand.vmem [shape: f32[2,16,8], index: 11, kind: input, shape index: {}]
  %s12 = inlined_call_operand.vmem [shape: f32[16,1], index: 12, kind: input, shape index: {}]
  %s13 = inlined_call_operand.vmem [shape: f32[2,16,16], index: 13, kind: input, shape index: {}]
  %s14 = inlined_call_operand.vmem [shape: f32[16,1], index: 14, kind: input, shape index: {}]
  %s15 = inlined_call_operand.vmem [shape: f32[16,8], index: 15, kind: input, shape index: {}]
  %s16 = inlined_call_operand.vmem [shape: f32[16,1], index: 16, kind: input, shape index: {}]
  %s17 = inlined_call_operand.vmem [shape: f32[16,8], index: 17, kind: input, shape index: {}]
  %s18 = inlined_call_operand.vmem [shape: f32[1,8], index: 18, kind: input, shape index: {}]
  %s19 = inlined_call_operand.hbm [shape: f32[2,16,16], index: 19, kind: output, shape index: {0}]
  %s20 = inlined_call_operand.vmem [shape: f32[2,16,8], index: 20, kind: output, shape index: {1}]
  %21 = xla_tuple %s19, %s20
  %s22 = sld [smem:[#allocation0]]
  $region117: #{tpu_custom_call.1} parent=0
    _
  %s24 = ssub.s32 1, %s22
  %s25 = scalar_select 0, %s24, %s22
  $region1: #{tpu_custom_call.1} parent=0
    #allocation2 [shape = 'u8[16384]{0}', space=vmem, size = 0x4000, scoped, tag = 'output window, operand 0']
    #allocation3 [shape = 's32[2]{0}', space=sflag, size = 0x8, scoped, tag = 'scoped memory for tpu_custom_call.1']
    %26 = vsyncpa [#allocation3], 0
    %s27 = scalar_lea.sflag [#allocation3], 1
    %28 = vsyncpa %s27, 0
    loop: start=0, step=1, limit=4
    $region2: #{tpu_custom_call.1} parent=1 // loop_pre_header
      _
    $region3: #{tpu_custom_call.1} parent=1 // loop_header
      %s30 = sphi 0, %s34
      %p31 = scmp.ge.s32.totalorder %s30, 4
      %s40 = sphi 0, %s42
      %s43 = sphi 0, %s40
      %s44 = sphi 0, %s43
      %s60 = sphi 0, %s44
      %s64 = sphi 0, %s64
      %s66 = sphi 0, %s64
      %s67 = sphi 0, %s66
      %s81 = sphi 0, %s67
      %s85 = sphi 0, %s85
      %s87 = sphi 0, %s85
      %s88 = sphi 0, %s87
      %s102 = sphi 0, %s88
      %s106 = sphi 0, %s106
      %s108 = sphi 0, %s106
      %s109 = sphi 0, %s108
      %s123 = sphi 0, %s109
      %s127 = sphi 0, %s127
      %s129 = sphi 0, %s127
      %s130 = sphi 0, %s129
      %s144 = sphi 0, %s130
      %s148 = sphi 0, %s148
      %s150 = sphi 0, %s148
      %s151 = sphi 0, %s150
      %s165 = sphi 0, %s151
      %s169 = sphi 0, %s169
      %s171 = sphi 0, %s169
      %s172 = sphi 0, %s171
      %s186 = sphi 0, %s172
      %s190 = sphi 0, %s190
      %s192 = sphi 0, %s190
      %s193 = sphi 0, %s192
      %s207 = sphi 0, %s193
      %s211 = sphi 0, %s211
      %s213 = sphi 0, %s211
      %s214 = sphi 0, %s213
      %s228 = sphi 0, %s214
      %s232 = sphi 0, %s232
      %s234 = sphi 0, %s232
      %s235 = sphi 0, %s234
      %s249 = sphi 0, %s235
      %s253 = sphi 0, %s253
      %s255 = sphi 0, %s253
      %s256 = sphi 0, %s255
      %s270 = sphi 0, %s256
      %s274 = sphi 0, %s274
      %s276 = sphi 0, %s274
      %s277 = sphi 0, %s276
      %s291 = sphi 0, %s277
      %s295 = sphi 0, %s295
      %s297 = sphi 0, %s295
      %s298 = sphi 0, %s297
      %s312 = sphi 0, %s298
      %s316 = sphi 0, %s316
      %s318 = sphi 0, %s316
      %s319 = sphi 0, %s318
      %s333 = sphi 0, %s319
      %s337 = sphi 0, %s337
      %s339 = sphi 0, %s337
      %s340 = sphi 0, %s339
      %s354 = sphi 0, %s340
      %s358 = sphi 0, %s358
      %s360 = sphi 0, %s358
      %s361 = sphi 0, %s360
      %s375 = sphi 0, %s361
      %s379 = sphi 0, %s379
      %s381 = sphi 0, %s379
      %s382 = sphi 0, %s381
      %s396 = sphi 0, %s382
      %s400 = sphi 0, %s400
      %s402 = sphi 0, %s400
      %s403 = sphi 0, %s402
      %s417 = sphi 0, %s403
      %s421 = sphi 0, %s421
      %s423 = sphi 0, %s421
      %s424 = sphi 0, %s423
      %s438 = sphi 0, %s424
      %s444 = sphi 0, %s446
      %s447 = sphi 0, %s444
      %s448 = sphi 0, %s447
      %s464 = sphi 0, %s448
      %s470 = sphi 0, %s472
      %s473 = sphi 0, %s470
      %s474 = sphi 0, %s473
      %s490 = sphi 0, %s474
    $region4: #{tpu_custom_call.1} parent=1 // loop_header_branch
      %33 = sbr.rel (%p31) target = $region8
    $region5: #{tpu_custom_call.1} parent=1 // loop_body
      %s35 = ssub.s32 %s30, 1
      %s36 = ssub.s32 %s30, 2
      %s37 = sadd.s32 %s30, 1
      %s38 = ssub.s32 %s30, %s37
      %p39 = scmp.eq.s32.totalorder %s38, 0
      %s41 = sadd.s32 %s40, 1
      %s42 = scalar_select %p39, %s40, %s41
      %p45 = pneg %p39
      %p46 = scmp.eq.s32.totalorder %s30, 1
      %p47 = por %p45, %p46
      %p48 = scmp.ne.s32.totalorder %s40, %s43
      %p49 = scmp.eq.s32.totalorder %s30, 0
      %p50 = por %p48, %p49
      %p51 = scmp.ne.s32.totalorder %s40, %s43
      %p52 = scmp.eq.s32.totalorder %s35, 1
      %p53 = por %p51, %p52
      %p54 = scmp.ne.s32.totalorder %s43, %s44
      %p55 = scmp.eq.s32.totalorder %s35, 0
      %p56 = por %p54, %p55
      %p57 = scmp.ne.s32.totalorder %s43, %s44
      %p58 = scmp.eq.s32.totalorder %s36, 1
      %p59 = por %p57, %p58
      %p61 = scmp.ne.s32.totalorder %s44, %s60
      %p62 = scmp.eq.s32.totalorder %s36, 0
      %p63 = por %p61, %p62
      %s65 = sadd.s32 %s64, 1
      %p68 = scmp.eq.s32.totalorder %s30, 1
      %p69 = scmp.ne.s32.totalorder %s64, %s66
      %p70 = scmp.eq.s32.totalorder %s30, 0
      %p71 = por %p69, %p70
      %p72 = scmp.ne.s32.totalorder %s64, %s66
      %p73 = scmp.eq.s32.totalorder %s35, 1
      %p74 = por %p72, %p73
      %p75 = scmp.ne.s32.totalorder %s66, %s67
      %p76 = scmp.eq.s32.totalorder %s35, 0
      %p77 = por %p75, %p76
      %p78 = scmp.ne.s32.totalorder %s66, %s67
      %p79 = scmp.eq.s32.totalorder %s36, 1
      %p80 = por %p78, %p79
      %p82 = scmp.ne.s32.totalorder %s67, %s81
      %p83 = scmp.eq.s32.totalorder %s36, 0
      %p84 = por %p82, %p83
      %s86 = sadd.s32 %s85, 1
      %p89 = scmp.eq.s32.totalorder %s30, 1
      %p90 = scmp.ne.s32.totalorder %s85, %s87
      %p91 = scmp.eq.s32.totalorder %s30, 0
      %p92 = por %p90, %p91
      %p93 = scmp.ne.s32.totalorder %s85, %s87
      %p94 = scmp.eq.s32.totalorder %s35, 1
      %p95 = por %p93, %p94
      %p96 = scmp.ne.s32.totalorder %s87, %s88
      %p97 = scmp.eq.s32.totalorder %s35, 0
      %p98 = por %p96, %p97
      %p99 = scmp.ne.s32.totalorder %s87, %s88
      %p100 = scmp.eq.s32.totalorder %s36, 1
      %p101 = por %p99, %p100
      %p103 = scmp.ne.s32.totalorder %s88, %s102
      %p104 = scmp.eq.s32.totalorder %s36, 0
      %p105 = por %p103, %p104
      %s107 = sadd.s32 %s106, 1
      %p110 = scmp.eq.s32.totalorder %s30, 1
      %p111 = scmp.ne.s32.totalorder %s106, %s108
      %p112 = scmp.eq.s32.totalorder %s30, 0
      %p113 = por %p111, %p112
      %p114 = scmp.ne.s32.totalorder %s106, %s108
      %p115 = scmp.eq.s32.totalorder %s35, 1
      %p116 = por %p114, %p115
      %p117 = scmp.ne.s32.totalorder %s108, %s109
      %p118 = scmp.eq.s32.totalorder %s35, 0
      %p119 = por %p117, %p118
      %p120 = scmp.ne.s32.totalorder %s108, %s109
      %p121 = scmp.eq.s32.totalorder %s36, 1
      %p122 = por %p120, %p121
      %p124 = scmp.ne.s32.totalorder %s109, %s123
      %p125 = scmp.eq.s32.totalorder %s36, 0
      %p126 = por %p124, %p125
      %s128 = sadd.s32 %s127, 1
      %p131 = scmp.eq.s32.totalorder %s30, 1
      %p132 = scmp.ne.s32.totalorder %s127, %s129
      %p133 = scmp.eq.s32.totalorder %s30, 0
      %p134 = por %p132, %p133
      %p135 = scmp.ne.s32.totalorder %s127, %s129
      %p136 = scmp.eq.s32.totalorder %s35, 1
      %p137 = por %p135, %p136
      %p138 = scmp.ne.s32.totalorder %s129, %s130
      %p139 = scmp.eq.s32.totalorder %s35, 0
      %p140 = por %p138, %p139
      %p141 = scmp.ne.s32.totalorder %s129, %s130
      %p142 = scmp.eq.s32.totalorder %s36, 1
      %p143 = por %p141, %p142
      %p145 = scmp.ne.s32.totalorder %s130, %s144
      %p146 = scmp.eq.s32.totalorder %s36, 0
      %p147 = por %p145, %p146
      %s149 = sadd.s32 %s148, 1
      %p152 = scmp.eq.s32.totalorder %s30, 1
      %p153 = scmp.ne.s32.totalorder %s148, %s150
      %p154 = scmp.eq.s32.totalorder %s30, 0
      %p155 = por %p153, %p154
      %p156 = scmp.ne.s32.totalorder %s148, %s150
      %p157 = scmp.eq.s32.totalorder %s35, 1
      %p158 = por %p156, %p157
      %p159 = scmp.ne.s32.totalorder %s150, %s151
      %p160 = scmp.eq.s32.totalorder %s35, 0
      %p161 = por %p159, %p160
      %p162 = scmp.ne.s32.totalorder %s150, %s151
      %p163 = scmp.eq.s32.totalorder %s36, 1
      %p164 = por %p162, %p163
      %p166 = scmp.ne.s32.totalorder %s151, %s165
      %p167 = scmp.eq.s32.totalorder %s36, 0
      %p168 = por %p166, %p167
      %s170 = sadd.s32 %s169, 1
      %p173 = scmp.eq.s32.totalorder %s30, 1
      %p174 = scmp.ne.s32.totalorder %s169, %s171
      %p175 = scmp.eq.s32.totalorder %s30, 0
      %p176 = por %p174, %p175
      %p177 = scmp.ne.s32.totalorder %s169, %s171
      %p178 = scmp.eq.s32.totalorder %s35, 1
      %p179 = por %p177, %p178
      %p180 = scmp.ne.s32.totalorder %s171, %s172
      %p181 = scmp.eq.s32.totalorder %s35, 0
      %p182 = por %p180, %p181
      %p183 = scmp.ne.s32.totalorder %s171, %s172
      %p184 = scmp.eq.s32.totalorder %s36, 1
      %p185 = por %p183, %p184
      %p187 = scmp.ne.s32.totalorder %s172, %s186
      %p188 = scmp.eq.s32.totalorder %s36, 0
      %p189 = por %p187, %p188
      %s191 = sadd.s32 %s190, 1
      %p194 = scmp.eq.s32.totalorder %s30, 1
      %p195 = scmp.ne.s32.totalorder %s190, %s192
      %p196 = scmp.eq.s32.totalorder %s30, 0
      %p197 = por %p195, %p196
      %p198 = scmp.ne.s32.totalorder %s190, %s192
      %p199 = scmp.eq.s32.totalorder %s35, 1
      %p200 = por %p198, %p199
      %p201 = scmp.ne.s32.totalorder %s192, %s193
      %p202 = scmp.eq.s32.totalorder %s35, 0
      %p203 = por %p201, %p202
      %p204 = scmp.ne.s32.totalorder %s192, %s193
      %p205 = scmp.eq.s32.totalorder %s36, 1
      %p206 = por %p204, %p205
      %p208 = scmp.ne.s32.totalorder %s193, %s207
      %p209 = scmp.eq.s32.totalorder %s36, 0
      %p210 = por %p208, %p209
      %s212 = sadd.s32 %s211, 1
      %p215 = scmp.eq.s32.totalorder %s30, 1
      %p216 = scmp.ne.s32.totalorder %s211, %s213
      %p217 = scmp.eq.s32.totalorder %s30, 0
      %p218 = por %p216, %p217
      %p219 = scmp.ne.s32.totalorder %s211, %s213
      %p220 = scmp.eq.s32.totalorder %s35, 1
      %p221 = por %p219, %p220
      %p222 = scmp.ne.s32.totalorder %s213, %s214
      %p223 = scmp.eq.s32.totalorder %s35, 0
      %p224 = por %p222, %p223
      %p225 = scmp.ne.s32.totalorder %s213, %s214
      %p226 = scmp.eq.s32.totalorder %s36, 1
      %p227 = por %p225, %p226
      %p229 = scmp.ne.s32.totalorder %s214, %s228
      %p230 = scmp.eq.s32.totalorder %s36, 0
      %p231 = por %p229, %p230
      %s233 = sadd.s32 %s232, 1
      %p236 = scmp.eq.s32.totalorder %s30, 1
      %p237 = scmp.ne.s32.totalorder %s232, %s234
      %p238 = scmp.eq.s32.totalorder %s30, 0
      %p239 = por %p237, %p238
      %p240 = scmp.ne.s32.totalorder %s232, %s234
      %p241 = scmp.eq.s32.totalorder %s35, 1
      %p242 = por %p240, %p241
      %p243 = scmp.ne.s32.totalorder %s234, %s235
      %p244 = scmp.eq.s32.totalorder %s35, 0
      %p245 = por %p243, %p244
      %p246 = scmp.ne.s32.totalorder %s234, %s235
      %p247 = scmp.eq.s32.totalorder %s36, 1
      %p248 = por %p246, %p247
      %p250 = scmp.ne.s32.totalorder %s235, %s249
      %p251 = scmp.eq.s32.totalorder %s36, 0
      %p252 = por %p250, %p251
      %s254 = sadd.s32 %s253, 1
      %p257 = scmp.eq.s32.totalorder %s30, 1
      %p258 = scmp.ne.s32.totalorder %s253, %s255
      %p259 = scmp.eq.s32.totalorder %s30, 0
      %p260 = por %p258, %p259
      %p261 = scmp.ne.s32.totalorder %s253, %s255
      %p262 = scmp.eq.s32.totalorder %s35, 1
      %p263 = por %p261, %p262
      %p264 = scmp.ne.s32.totalorder %s255, %s256
      %p265 = scmp.eq.s32.totalorder %s35, 0
      %p266 = por %p264, %p265
      %p267 = scmp.ne.s32.totalorder %s255, %s256
      %p268 = scmp.eq.s32.totalorder %s36, 1
      %p269 = por %p267, %p268
      %p271 = scmp.ne.s32.totalorder %s256, %s270
      %p272 = scmp.eq.s32.totalorder %s36, 0
      %p273 = por %p271, %p272
      %s275 = sadd.s32 %s274, 1
      %p278 = scmp.eq.s32.totalorder %s30, 1
      %p279 = scmp.ne.s32.totalorder %s274, %s276
      %p280 = scmp.eq.s32.totalorder %s30, 0
      %p281 = por %p279, %p280
      %p282 = scmp.ne.s32.totalorder %s274, %s276
      %p283 = scmp.eq.s32.totalorder %s35, 1
      %p284 = por %p282, %p283
      %p285 = scmp.ne.s32.totalorder %s276, %s277
      %p286 = scmp.eq.s32.totalorder %s35, 0
      %p287 = por %p285, %p286
      %p288 = scmp.ne.s32.totalorder %s276, %s277
      %p289 = scmp.eq.s32.totalorder %s36, 1
      %p290 = por %p288, %p289
      %p292 = scmp.ne.s32.totalorder %s277, %s291
      %p293 = scmp.eq.s32.totalorder %s36, 0
      %p294 = por %p292, %p293
      %s296 = sadd.s32 %s295, 1
      %p299 = scmp.eq.s32.totalorder %s30, 1
      %p300 = scmp.ne.s32.totalorder %s295, %s297
      %p301 = scmp.eq.s32.totalorder %s30, 0
      %p302 = por %p300, %p301
      %p303 = scmp.ne.s32.totalorder %s295, %s297
      %p304 = scmp.eq.s32.totalorder %s35, 1
      %p305 = por %p303, %p304
      %p306 = scmp.ne.s32.totalorder %s297, %s298
      %p307 = scmp.eq.s32.totalorder %s35, 0
      %p308 = por %p306, %p307
      %p309 = scmp.ne.s32.totalorder %s297, %s298
      %p310 = scmp.eq.s32.totalorder %s36, 1
      %p311 = por %p309, %p310
      %p313 = scmp.ne.s32.totalorder %s298, %s312
      %p314 = scmp.eq.s32.totalorder %s36, 0
      %p315 = por %p313, %p314
      %s317 = sadd.s32 %s316, 1
      %p320 = scmp.eq.s32.totalorder %s30, 1
      %p321 = scmp.ne.s32.totalorder %s316, %s318
      %p322 = scmp.eq.s32.totalorder %s30, 0
      %p323 = por %p321, %p322
      %p324 = scmp.ne.s32.totalorder %s316, %s318
      %p325 = scmp.eq.s32.totalorder %s35, 1
      %p326 = por %p324, %p325
      %p327 = scmp.ne.s32.totalorder %s318, %s319
      %p328 = scmp.eq.s32.totalorder %s35, 0
      %p329 = por %p327, %p328
      %p330 = scmp.ne.s32.totalorder %s318, %s319
      %p331 = scmp.eq.s32.totalorder %s36, 1
      %p332 = por %p330, %p331
      %p334 = scmp.ne.s32.totalorder %s319, %s333
      %p335 = scmp.eq.s32.totalorder %s36, 0
      %p336 = por %p334, %p335
      %s338 = sadd.s32 %s337, 1
      %p341 = scmp.eq.s32.totalorder %s30, 1
      %p342 = scmp.ne.s32.totalorder %s337, %s339
      %p343 = scmp.eq.s32.totalorder %s30, 0
      %p344 = por %p342, %p343
      %p345 = scmp.ne.s32.totalorder %s337, %s339
      %p346 = scmp.eq.s32.totalorder %s35, 1
      %p347 = por %p345, %p346
      %p348 = scmp.ne.s32.totalorder %s339, %s340
      %p349 = scmp.eq.s32.totalorder %s35, 0
      %p350 = por %p348, %p349
      %p351 = scmp.ne.s32.totalorder %s339, %s340
      %p352 = scmp.eq.s32.totalorder %s36, 1
      %p353 = por %p351, %p352
      %p355 = scmp.ne.s32.totalorder %s340, %s354
      %p356 = scmp.eq.s32.totalorder %s36, 0
      %p357 = por %p355, %p356
      %s359 = sadd.s32 %s358, 1
      %p362 = scmp.eq.s32.totalorder %s30, 1
      %p363 = scmp.ne.s32.totalorder %s358, %s360
      %p364 = scmp.eq.s32.totalorder %s30, 0
      %p365 = por %p363, %p364
      %p366 = scmp.ne.s32.totalorder %s358, %s360
      %p367 = scmp.eq.s32.totalorder %s35, 1
      %p368 = por %p366, %p367
      %p369 = scmp.ne.s32.totalorder %s360, %s361
      %p370 = scmp.eq.s32.totalorder %s35, 0
      %p371 = por %p369, %p370
      %p372 = scmp.ne.s32.totalorder %s360, %s361
      %p373 = scmp.eq.s32.totalorder %s36, 1
      %p374 = por %p372, %p373
      %p376 = scmp.ne.s32.totalorder %s361, %s375
      %p377 = scmp.eq.s32.totalorder %s36, 0
      %p378 = por %p376, %p377
      %s380 = sadd.s32 %s379, 1
      %p383 = scmp.eq.s32.totalorder %s30, 1
      %p384 = scmp.ne.s32.totalorder %s379, %s381
      %p385 = scmp.eq.s32.totalorder %s30, 0
      %p386 = por %p384, %p385
      %p387 = scmp.ne.s32.totalorder %s379, %s381
      %p388 = scmp.eq.s32.totalorder %s35, 1
      %p389 = por %p387, %p388
      %p390 = scmp.ne.s32.totalorder %s381, %s382
      %p391 = scmp.eq.s32.totalorder %s35, 0
      %p392 = por %p390, %p391
      %p393 = scmp.ne.s32.totalorder %s381, %s382
      %p394 = scmp.eq.s32.totalorder %s36, 1
      %p395 = por %p393, %p394
      %p397 = scmp.ne.s32.totalorder %s382, %s396
      %p398 = scmp.eq.s32.totalorder %s36, 0
      %p399 = por %p397, %p398
      %s401 = sadd.s32 %s400, 1
      %p404 = scmp.eq.s32.totalorder %s30, 1
      %p405 = scmp.ne.s32.totalorder %s400, %s402
      %p406 = scmp.eq.s32.totalorder %s30, 0
      %p407 = por %p405, %p406
      %p408 = scmp.ne.s32.totalorder %s400, %s402
      %p409 = scmp.eq.s32.totalorder %s35, 1
      %p410 = por %p408, %p409
      %p411 = scmp.ne.s32.totalorder %s402, %s403
      %p412 = scmp.eq.s32.totalorder %s35, 0
      %p413 = por %p411, %p412
      %p414 = scmp.ne.s32.totalorder %s402, %s403
      %p415 = scmp.eq.s32.totalorder %s36, 1
      %p416 = por %p414, %p415
      %p418 = scmp.ne.s32.totalorder %s403, %s417
      %p419 = scmp.eq.s32.totalorder %s36, 0
      %p420 = por %p418, %p419
      %s422 = sadd.s32 %s421, 1
      %p425 = scmp.eq.s32.totalorder %s30, 1
      %p426 = scmp.ne.s32.totalorder %s421, %s423
      %p427 = scmp.eq.s32.totalorder %s30, 0
      %p428 = por %p426, %p427
      %p429 = scmp.ne.s32.totalorder %s421, %s423
      %p430 = scmp.eq.s32.totalorder %s35, 1
      %p431 = por %p429, %p430
      %p432 = scmp.ne.s32.totalorder %s423, %s424
      %p433 = scmp.eq.s32.totalorder %s35, 0
      %p434 = por %p432, %p433
      %p435 = scmp.ne.s32.totalorder %s423, %s424
      %p436 = scmp.eq.s32.totalorder %s36, 1
      %p437 = por %p435, %p436
      %p439 = scmp.ne.s32.totalorder %s424, %s438
      %p440 = scmp.eq.s32.totalorder %s36, 0
      %p441 = por %p439, %p440
      %s442 = ssub.s32 %s30, %s37
      %p443 = scmp.eq.s32.totalorder %s442, 0
      %s445 = sadd.s32 %s444, 1
      %s446 = scalar_select %p443, %s444, %s445
      %p449 = pneg %p443
      %p450 = scmp.eq.s32.totalorder %s30, 1
      %p451 = por %p449, %p450
      %p452 = scmp.ne.s32.totalorder %s444, %s447
      %p453 = scmp.eq.s32.totalorder %s30, 0
      %p454 = por %p452, %p453
      %p455 = scmp.ne.s32.totalorder %s444, %s447
      %p456 = scmp.eq.s32.totalorder %s35, 1
      %p457 = por %p455, %p456
      %p458 = scmp.ne.s32.totalorder %s447, %s448
      %p459 = scmp.eq.s32.totalorder %s35, 0
      %p460 = por %p458, %p459
      %p461 = scmp.ne.s32.totalorder %s447, %s448
      %p462 = scmp.eq.s32.totalorder %s36, 1
      %p463 = por %p461, %p462
      %p465 = scmp.ne.s32.totalorder %s448, %s464
      %p466 = scmp.eq.s32.totalorder %s36, 0
      %p467 = por %p465, %p466
      %s468 = ssub.s32 %s30, %s37
      %p469 = scmp.eq.s32.totalorder %s468, 0
      %s471 = sadd.s32 %s470, 1
      %s472 = scalar_select %p469, %s470, %s471
      %p475 = pneg %p469
      %p476 = scmp.eq.s32.totalorder %s30, 1
      %p477 = por %p475, %p476
      %p478 = scmp.ne.s32.totalorder %s470, %s473
      %p479 = scmp.eq.s32.totalorder %s30, 0
      %p480 = por %p478, %p479
      %p481 = scmp.ne.s32.totalorder %s470, %s473
      %p482 = scmp.eq.s32.totalorder %s35, 1
      %p483 = por %p481, %p482
      %p484 = scmp.ne.s32.totalorder %s473, %s474
      %p485 = scmp.eq.s32.totalorder %s35, 0
      %p486 = por %p484, %p485
      %p487 = scmp.ne.s32.totalorder %s473, %s474
      %p488 = scmp.eq.s32.totalorder %s36, 1
      %p489 = por %p487, %p488
      %p491 = scmp.ne.s32.totalorder %s474, %s490
      %p492 = scmp.eq.s32.totalorder %s36, 0
      %p493 = por %p491, %p492
      %p494 = scmp.le.s32.totalorder 1, %s30
      %p495 = scmp.lt.s32.totalorder %s30, 3
      %p496 = pnand %p494, %p495
      %p497 = pneg %p496
      // Predicated region
      $region9: #{tpu_custom_call.1} parent=5 // pred_check
        _
      $region10: #{tpu_custom_call.1} parent=5 // pred_check_branch
        %499 = sbr.rel (%p496) target = $region12
      $region11: #{tpu_custom_call.1} parent=5 // pred_region
        %s500 = ssub.s32 %s30, 1
        // Predicated region
        $region13: #{tpu_custom_call.1} parent=11 // pred_check
          %p501 = pneg %p77
        $region14: #{tpu_custom_call.1} parent=11 // pred_check_branch
          %503 = sbr.rel (%p501) target = $region16
        $region15: #{tpu_custom_call.1} parent=11 // pred_region
          _
        $region16: #{tpu_custom_call.1} parent=11 // pred_fallthru
          _
        // Predicated region
        $region17: #{tpu_custom_call.1} parent=11 // pred_check
          %p504 = pneg %p98
        $region18: #{tpu_custom_call.1} parent=11 // pred_check_branch
          %506 = sbr.rel (%p504) target = $region20
        $region19: #{tpu_custom_call.1} parent=11 // pred_region
          _
        $region20: #{tpu_custom_call.1} parent=11 // pred_fallthru
          _
        // Predicated region
        $region21: #{tpu_custom_call.1} parent=11 // pred_check
          %p507 = pneg %p119
        $region22: #{tpu_custom_call.1} parent=11 // pred_check_branch
          %509 = sbr.rel (%p507) target = $region24
        $region23: #{tpu_custom_call.1} parent=11 // pred_region
          _
        $region24: #{tpu_custom_call.1} parent=11 // pred_fallthru
          _
        // Predicated region
        $region25: #{tpu_custom_call.1} parent=11 // pred_check
          %p510 = pneg %p140
        $region26: #{tpu_custom_call.1} parent=11 // pred_check_branch
          %512 = sbr.rel (%p510) target = $region28
        $region27: #{tpu_custom_call.1} parent=11 // pred_region
          _
        $region28: #{tpu_custom_call.1} parent=11 // pred_fallthru
          _
        // Predicated region
        $region29: #{tpu_custom_call.1} parent=11 // pred_check
          %p513 = pneg %p161
        $region30: #{tpu_custom_call.1} parent=11 // pred_check_branch
          %515 = sbr.rel (%p513) target = $region32
        $region31: #{tpu_custom_call.1} parent=11 // pred_region
          _
        $region32: #{tpu_custom_call.1} parent=11 // pred_fallthru
          _
        // Predicated region
        $region33: #{tpu_custom_call.1} parent=11 // pred_check
          %p516 = pneg %p182
        $region34: #{tpu_custom_call.1} parent=11 // pred_check_branch
          %518 = sbr.rel (%p516) target = $region36
        $region35: #{tpu_custom_call.1} parent=11 // pred_region
          _
        $region36: #{tpu_custom_call.1} parent=11 // pred_fallthru
          _
        // Predicated region
        $region37: #{tpu_custom_call.1} parent=11 // pred_check
          %p519 = pneg %p203
        $region38: #{tpu_custom_call.1} parent=11 // pred_check_branch
          %521 = sbr.rel (%p519) target = $region40
        $region39: #{tpu_custom_call.1} parent=11 // pred_region
          _
        $region40: #{tpu_custom_call.1} parent=11 // pred_fallthru
          _
        // Predicated region
        $region41: #{tpu_custom_call.1} parent=11 // pred_check
          %p522 = pneg %p224
        $region42: #{tpu_custom_call.1} parent=11 // pred_check_branch
          %524 = sbr.rel (%p522) target = $region44
        $region43: #{tpu_custom_call.1} parent=11 // pred_region
          _
        $region44: #{tpu_custom_call.1} parent=11 // pred_fallthru
          _
        // Predicated region
        $region45: #{tpu_custom_call.1} parent=11 // pred_check
          %p525 = pneg %p245
        $region46: #{tpu_custom_call.1} parent=11 // pred_check_branch
          %527 = sbr.rel (%p525) target = $region48
        $region47: #{tpu_custom_call.1} parent=11 // pred_region
          _
        $region48: #{tpu_custom_call.1} parent=11 // pred_fallthru
          _
        // Predicated region
        $region49: #{tpu_custom_call.1} parent=11 // pred_check
          %p528 = pneg %p266
        $region50: #{tpu_custom_call.1} parent=11 // pred_check_branch
          %530 = sbr.rel (%p528) target = $region52
        $region51: #{tpu_custom_call.1} parent=11 // pred_region
          _
        $region52: #{tpu_custom_call.1} parent=11 // pred_fallthru
          _
        // Predicated region
        $region53: #{tpu_custom_call.1} parent=11 // pred_check
          %p531 = pneg %p287
        $region54: #{tpu_custom_call.1} parent=11 // pred_check_branch
          %533 = sbr.rel (%p531) target = $region56
        $region55: #{tpu_custom_call.1} parent=11 // pred_region
          _
        $region56: #{tpu_custom_call.1} parent=11 // pred_fallthru
          _
        // Predicated region
        $region57: #{tpu_custom_call.1} parent=11 // pred_check
          %p534 = pneg %p308
        $region58: #{tpu_custom_call.1} parent=11 // pred_check_branch
          %536 = sbr.rel (%p534) target = $region60
        $region59: #{tpu_custom_call.1} parent=11 // pred_region
          _
        $region60: #{tpu_custom_call.1} parent=11 // pred_fallthru
          _
        // Predicated region
        $region61: #{tpu_custom_call.1} parent=11 // pred_check
          %p537 = pneg %p329
        $region62: #{tpu_custom_call.1} parent=11 // pred_check_branch
          %539 = sbr.rel (%p537) target = $region64
        $region63: #{tpu_custom_call.1} parent=11 // pred_region
          _
        $region64: #{tpu_custom_call.1} parent=11 // pred_fallthru
          _
        // Predicated region
        $region65: #{tpu_custom_call.1} parent=11 // pred_check
          %p540 = pneg %p350
        $region66: #{tpu_custom_call.1} parent=11 // pred_check_branch
          %542 = sbr.rel (%p540) target = $region68
        $region67: #{tpu_custom_call.1} parent=11 // pred_region
          _
        $region68: #{tpu_custom_call.1} parent=11 // pred_fallthru
          _
        // Predicated region
        $region69: #{tpu_custom_call.1} parent=11 // pred_check
          %p543 = pneg %p371
        $region70: #{tpu_custom_call.1} parent=11 // pred_check_branch
          %545 = sbr.rel (%p543) target = $region72
        $region71: #{tpu_custom_call.1} parent=11 // pred_region
          _
        $region72: #{tpu_custom_call.1} parent=11 // pred_fallthru
          _
        // Predicated region
        $region73: #{tpu_custom_call.1} parent=11 // pred_check
          %p546 = pneg %p392
        $region74: #{tpu_custom_call.1} parent=11 // pred_check_branch
          %548 = sbr.rel (%p546) target = $region76
        $region75: #{tpu_custom_call.1} parent=11 // pred_region
          _
        $region76: #{tpu_custom_call.1} parent=11 // pred_fallthru
          _
        // Predicated region
        $region77: #{tpu_custom_call.1} parent=11 // pred_check
          %p549 = pneg %p413
        $region78: #{tpu_custom_call.1} parent=11 // pred_check_branch
          %551 = sbr.rel (%p549) target = $region80
        $region79: #{tpu_custom_call.1} parent=11 // pred_region
          _
        $region80: #{tpu_custom_call.1} parent=11 // pred_fallthru
          _
        // Predicated region
        $region81: #{tpu_custom_call.1} parent=11 // pred_check
          %p552 = pneg %p434
        $region82: #{tpu_custom_call.1} parent=11 // pred_check_branch
          %554 = sbr.rel (%p552) target = $region84
        $region83: #{tpu_custom_call.1} parent=11 // pred_region
          _
        $region84: #{tpu_custom_call.1} parent=11 // pred_fallthru
          _
      $region12: #{tpu_custom_call.1} parent=5 // pred_fallthru
        _
      %p555 = scmp.lt.s32.totalorder %s30, 2
      // Predicated region
      $region85: #{tpu_custom_call.1} parent=5 // pred_check
        %p556 = pneg %p555
      $region86: #{tpu_custom_call.1} parent=5 // pred_check_branch
        %558 = sbr.rel (%p556) target = $region88
      $region87: #{tpu_custom_call.1} parent=5 // pred_region
        // Predicated region
        $region89: #{tpu_custom_call.1} parent=87 // pred_check
          %p559 = pneg %p50
        $region90: #{tpu_custom_call.1} parent=87 // pred_check_branch
          %561 = sbr.rel (%p559) target = $region92
        $region91: #{tpu_custom_call.1} parent=87 // pred_region
          %p562 = scmp.lt.s32.totalorder %s30, 1
          %s563 = scalar_select %p562, %s30, 1
          %s564 = smul.addr %s563, 4
          %s565 = scalar_lea.vmem %s0, %s564
        $region92: #{tpu_custom_call.1} parent=87 // pred_fallthru
          _
      $region88: #{tpu_custom_call.1} parent=5 // pred_fallthru
        _
      %p566 = scmp.le.s32.totalorder 1, %s30
      %p567 = scmp.lt.s32.totalorder %s30, 3
      %p568 = pnand %p566, %p567
      %p569 = pneg %p568
      // Predicated region
      $region93: #{tpu_custom_call.1} parent=5 // pred_check
        _
      $region94: #{tpu_custom_call.1} parent=5 // pred_check_branch
        %571 = sbr.rel (%p568) target = $region96
      $region95: #{tpu_custom_call.1} parent=5 // pred_region
        %s572 = ssub.s32 %s30, 1
        %p573 = scmp.lt.s32.totalorder %s35, 1
        %s574 = scalar_select %p573, %s35, 1
        %s575 = smul.addr %s574, 4
        %s576 = scalar_lea.vmem %s0, %s575
        %p577 = pneg %p56
        %p578 = pneg %p53
        %p579 = pneg %p77
        %p580 = pneg %p74
        %p581 = pneg %p98
        %p582 = pneg %p95
        %p583 = pneg %p119
        %p584 = pneg %p116
        %p585 = pneg %p140
        %p586 = pneg %p137
        %p587 = pneg %p161
        %p588 = pneg %p158
        %p589 = pneg %p182
        %p590 = pneg %p179
        %p591 = pneg %p203
        %p592 = pneg %p200
        %p593 = pneg %p224
        %p594 = pneg %p221
        %p595 = pneg %p245
        %p596 = pneg %p242
        %p597 = pneg %p266
        %p598 = pneg %p263
        %p599 = pneg %p287
        %p600 = pneg %p284
        %p601 = pneg %p308
        %p602 = pneg %p305
        %p603 = pneg %p329
        %p604 = pneg %p326
        %p605 = pneg %p350
        %p606 = pneg %p347
        %p607 = pneg %p371
        %p608 = pneg %p368
        %p609 = pneg %p392
        %p610 = pneg %p389
        %p611 = pneg %p413
        %p612 = pneg %p410
        %p613 = pneg %p434
        %p614 = pneg %p431
        %p615 = pneg %p460
        %p616 = pneg %p457
        %s617 = sand.u32 %s447, 1
        %s618 = scalar_lea.sflag [#allocation3], %s617
        %s619 = sand.u32 %s447, 1
        %s620 = smul.addr %s619, 16
        %s621 = scalar_lea.vmem [#allocation2], %s620
        %p622 = pneg %p486
        %p623 = pneg %p483
        %p624 = scmp.lt.s32.totalorder %s35, 1
        %s625 = scalar_select %p624, %s35, 1
        %s626 = smul.addr %s625, 2
        %s627 = smul.addr %s626, 8
        %s628 = scalar_lea.vmem %s20, %s627
        %p629 = scmp.lt.s32.totalorder %s35, 1
        %s630 = scalar_select %p629, %s35, 1
        %s631 = smul.addr %s630, 4
        %s632 = scalar_lea.vmem %s0, %s631
        %p633 = scmp.lt.s32.totalorder %s35, 1
        %s634 = scalar_select %p633, %s35, 1
        %s635 = smul.addr %s634, 2
        %s636 = smul.addr %s635, 8
        %s637 = scalar_lea.vmem %s20, %s636
        %v638 = vld [vmem:[%s632] sm:$0xf]
        %v639 = vld [vmem:[%s5] sm:$0xff]
        %v640 = vld [vmem:[%s6] sm:$0xff]
        %642 = vset.pattern.permute.xlu0 0
        %643 = vperm.xlu0 %642, %v640
        %v644 = vpop.permute.xlu0 %643
        %vm646 = vcmask 31744
        %v648 = vsel %vm646, %v639, 0
        %vm650 = vcmask 1043456
        %v652 = vsel %vm650, %v638, 0
        %654 = vmatpush.msra.mxu0 0.0
        %655 = vmatpush.msra.mxu0 0.0
        %656 = vmatpush.msra.mxu0 0.0
        %657 = vmatpush.msra.mxu0 0.0
        %658 = vmatpush.msra.mxu0 0.0
        %659 = vmatpush.msra.mxu0 0.0
        %660 = vmatpush.msra.mxu0 0.0
        %661 = vmatpush.msra.mxu0 0.0
        %662 = vmatpush.msra.mxu0 0.0
        %663 = vmatpush.msra.mxu0 0.0
        %664 = vmatpush.msra.mxu0 0.0
        %665 = vmatpush.msra.mxu0 0.0
        %666 = vmatpush.msra.mxu0 0.0
        %667 = vmatpush.msra.mxu0 0.0
        %668 = vmatpush.msra.mxu0 0.0
        %669 = vmatpush.msra.mxu0 %v652
        %670 = vmatmul.f32.gmra.mxu0 %v648
        %v671 = vpop.f32.mrf.mxu0
        %v672 = vadd.f32 %v644, %v671
        %673 = vdwg.mxu0
        %s674 = scalar_lea.vmem %s1, 8
        %v675 = vld [vmem:[%s674] sm:$0xff]
        %v676 = vlaneseq
        %v677 = vshrl.u32 %v676, 7
        %v678 = vadd.s32 %v677, 8
        %v679 = vlaneseq
        %v680 = vand.u32 %v679, 127
        %v681 = vsub.s32 %v680, %v677
        %v682 = vsub.s32 %v680, %v678
        %vm683 = vcmp.eq.s32.totalorder %v681, 1
        %vm684 = vcmp.eq.s32.totalorder %v682, 1
        %v685 = vsel %vm683, 1.0, 0.0
        %v686 = vsel %vm684, 1.0, 0.0
        %vm687 = vcmask 130048
        %v688 = vsel %vm687, %v638, 0
        %690 = vmatpush.msra.mxu0 0.0
        %691 = vmatpush.msra.mxu0 0.0
        %692 = vmatpush.msra.mxu0 0.0
        %693 = vmatpush.msra.mxu0 0.0
        %694 = vmatpush.msra.mxu0 0.0
        %695 = vmatpush.msra.mxu0 0.0
        %696 = vmatpush.msra.mxu0 0.0
        %697 = vmatpush.msra.mxu0 0.0
        %698 = vmatpush.msra.mxu0 0.0
        %699 = vmatpush.msra.mxu0 0.0
        %700 = vmatpush.msra.mxu0 0.0
        %701 = vmatpush.msra.mxu0 0.0
        %702 = vmatpush.msra.mxu0 0.0
        %703 = vmatpush.msra.mxu0 0.0
        %704 = vmatpush.msra.mxu0 %v686
        %705 = vmatpush.msra.mxu0 %v685
        %706 = vmatmul.f32.gmra.mxu0 %v688
        %v707 = vpop.f32.mrf.mxu0
        %v708 = vadd.f32 0.0, %v707
        %709 = vdwg.mxu0
        %v710 = vld [vmem:[%s1] sm:$0xff]
        %v712 = vsel %vm646, %v710, 0
        %v715 = vsel %vm650, %v708, 0
        %717 = vmatpush.msra.mxu0 0.0
        %718 = vmatpush.msra.mxu0 0.0
        %719 = vmatpush.msra.mxu0 0.0
        %720 = vmatpush.msra.mxu0 0.0
        %721 = vmatpush.msra.mxu0 0.0
        %722 = vmatpush.msra.mxu0 0.0
        %723 = vmatpush.msra.mxu0 0.0
        %724 = vmatpush.msra.mxu0 0.0
        %725 = vmatpush.msra.mxu0 0.0
        %726 = vmatpush.msra.mxu0 0.0
        %727 = vmatpush.msra.mxu0 0.0
        %728 = vmatpush.msra.mxu0 0.0
        %729 = vmatpush.msra.mxu0 0.0
        %730 = vmatpush.msra.mxu0 0.0
        %731 = vmatpush.msra.mxu0 0.0
        %732 = vmatpush.msra.mxu0 %v715
        %733 = vmatmul.f32.gmra.mxu0 %v712
        %v734 = vpop.f32.mrf.mxu0
        %v735 = vadd.f32 0.0, %v734
        %736 = vdwg.mxu0
        %v738 = vsel %vm646, %v675, 0
        %740 = vmatpush.msra.mxu0 0.0
        %741 = vmatpush.msra.mxu0 0.0
        %742 = vmatpush.msra.mxu0 0.0
        %743 = vmatpush.msra.mxu0 0.0
        %744 = vmatpush.msra.mxu0 0.0
        %745 = vmatpush.msra.mxu0 0.0
        %746 = vmatpush.msra.mxu0 0.0
        %747 = vmatpush.msra.mxu0 0.0
        %748 = vmatpush.msra.mxu0 0.0
        %749 = vmatpush.msra.mxu0 0.0
        %750 = vmatpush.msra.mxu0 0.0
        %751 = vmatpush.msra.mxu0 0.0
        %752 = vmatpush.msra.mxu0 0.0
        %753 = vmatpush.msra.mxu0 0.0
        %754 = vmatpush.msra.mxu0 0.0
        %755 = vmatpush.msra.mxu0 %v652
        %756 = vmatmul.f32.gmra.mxu0 %v738
        %v757 = vpop.f32.mrf.mxu0
        %v758 = vadd.f32 %v735, %v757
        %759 = vdwg.mxu0
        %v760 = vld [vmem:[%s2] sm:$0xff]
        %762 = vset.pattern.permute.xlu0 0
        %763 = vperm.xlu0 %762, %v760
        %v764 = vpop.permute.xlu0 %763
        %v766 = vadd.f32 %v758, %v764
        %v767 = vmax.f32 %v766, 0.0
        %s768 = scalar_lea.vmem %s3, 8
        %v769 = vld [vmem:[%s768] sm:$0xff]
        %v771 = vsel %vm687, %v767, 0
        %773 = vmatpush.msra.mxu0 0.0
        %774 = vmatpush.msra.mxu0 0.0
        %775 = vmatpush.msra.mxu0 0.0
        %776 = vmatpush.msra.mxu0 0.0
        %777 = vmatpush.msra.mxu0 0.0
        %778 = vmatpush.msra.mxu0 0.0
        %779 = vmatpush.msra.mxu0 0.0
        %780 = vmatpush.msra.mxu0 0.0
        %781 = vmatpush.msra.mxu0 0.0
        %782 = vmatpush.msra.mxu0 0.0
        %783 = vmatpush.msra.mxu0 0.0
        %784 = vmatpush.msra.mxu0 0.0
        %785 = vmatpush.msra.mxu0 0.0
        %786 = vmatpush.msra.mxu0 0.0
        %787 = vmatpush.msra.mxu0 %v686
        %788 = vmatpush.msra.mxu0 %v685
        %789 = vmatmul.f32.gmra.mxu0 %v771
        %v790 = vpop.f32.mrf.mxu0
        %v791 = vadd.f32 0.0, %v790
        %792 = vdwg.mxu0
        %v793 = vld [vmem:[%s3] sm:$0xff]
        %vm794 = vcmask 64512
        %v796 = vsel %vm794, %v793, 0
        %798 = vmatpush.msra.mxu0 0.0
        %799 = vmatpush.msra.mxu0 0.0
        %800 = vmatpush.msra.mxu0 0.0
        %801 = vmatpush.msra.mxu0 0.0
        %802 = vmatpush.msra.mxu0 0.0
        %803 = vmatpush.msra.mxu0 0.0
        %804 = vmatpush.msra.mxu0 0.0
        %805 = vmatpush.msra.mxu0 0.0
        %806 = vmatpush.msra.mxu0 0.0
        %807 = vmatpush.msra.mxu0 0.0
        %808 = vmatpush.msra.mxu0 0.0
        %809 = vmatpush.msra.mxu0 0.0
        %810 = vmatpush.msra.mxu0 0.0
        %811 = vmatpush.msra.mxu0 0.0
        %812 = vmatpush.msra.mxu0 0.0
        %813 = vmatpush.msra.mxu0 %v791
        %814 = vmatmul.f32.gmra.mxu0 %v796
        %v815 = vpop.f32.mrf.mxu0
        %v816 = vadd.f32 0.0, %v815
        %817 = vdwg.mxu0
        %v819 = vsel %vm794, %v769, 0
        %821 = vmatpush.msra.mxu0 0.0
        %822 = vmatpush.msra.mxu0 0.0
        %823 = vmatpush.msra.mxu0 0.0
        %824 = vmatpush.msra.mxu0 0.0
        %825 = vmatpush.msra.mxu0 0.0
        %826 = vmatpush.msra.mxu0 0.0
        %827 = vmatpush.msra.mxu0 0.0
        %828 = vmatpush.msra.mxu0 0.0
        %829 = vmatpush.msra.mxu0 0.0
        %830 = vmatpush.msra.mxu0 0.0
        %831 = vmatpush.msra.mxu0 0.0
        %832 = vmatpush.msra.mxu0 0.0
        %833 = vmatpush.msra.mxu0 0.0
        %834 = vmatpush.msra.mxu0 0.0
        %835 = vmatpush.msra.mxu0 0.0
        %836 = vmatpush.msra.mxu0 %v767
        %837 = vmatmul.f32.gmra.mxu0 %v819
        %v838 = vpop.f32.mrf.mxu0
        %v839 = vadd.f32 %v816, %v838
        %840 = vdwg.mxu0
        %v841 = vld [vmem:[%s4] sm:$0xff]
        %843 = vset.pattern.permute.xlu0 0
        %844 = vperm.xlu0 %843, %v841
        %v845 = vpop.permute.xlu0 %844
        %v847 = vadd.f32 %v839, %v845
        %v848 = vmax.f32 %v847, 0.0
        %v849 = vadd.f32 %v848, %v672
        %v850 = vmax.f32 %v849, 0.0
        %s851 = scalar_lea.vmem %s7, 8
        %v852 = vld [vmem:[%s851] sm:$0xff]
        %vm853 = vcmp.eq.s32.totalorder %v681, 2
        %vm854 = vcmp.eq.s32.totalorder %v682, 2
        %v855 = vsel %vm853, 1.0, 0.0
        %v856 = vsel %vm854, 1.0, 0.0
        %v858 = vsel %vm687, %v850, 0
        %860 = vmatpush.msra.mxu0 0.0
        %861 = vmatpush.msra.mxu0 0.0
        %862 = vmatpush.msra.mxu0 0.0
        %863 = vmatpush.msra.mxu0 0.0
        %864 = vmatpush.msra.mxu0 0.0
        %865 = vmatpush.msra.mxu0 0.0
        %866 = vmatpush.msra.mxu0 0.0
        %867 = vmatpush.msra.mxu0 0.0
        %868 = vmatpush.msra.mxu0 0.0
        %869 = vmatpush.msra.mxu0 0.0
        %870 = vmatpush.msra.mxu0 0.0
        %871 = vmatpush.msra.mxu0 0.0
        %872 = vmatpush.msra.mxu0 0.0
        %873 = vmatpush.msra.mxu0 0.0
        %874 = vmatpush.msra.mxu0 %v856
        %875 = vmatpush.msra.mxu0 %v855
        %876 = vmatmul.f32.gmra.mxu0 %v858
        %v877 = vpop.f32.mrf.mxu0
        %v878 = vadd.f32 0.0, %v877
        %879 = vdwg.mxu0
        %v880 = vld [vmem:[%s7] sm:$0xff]
        %v882 = vsel %vm794, %v880, 0
        %884 = vmatpush.msra.mxu0 0.0
        %885 = vmatpush.msra.mxu0 0.0
        %886 = vmatpush.msra.mxu0 0.0
        %887 = vmatpush.msra.mxu0 0.0
        %888 = vmatpush.msra.mxu0 0.0
        %889 = vmatpush.msra.mxu0 0.0
        %890 = vmatpush.msra.mxu0 0.0
        %891 = vmatpush.msra.mxu0 0.0
        %892 = vmatpush.msra.mxu0 0.0
        %893 = vmatpush.msra.mxu0 0.0
        %894 = vmatpush.msra.mxu0 0.0
        %895 = vmatpush.msra.mxu0 0.0
        %896 = vmatpush.msra.mxu0 0.0
        %897 = vmatpush.msra.mxu0 0.0
        %898 = vmatpush.msra.mxu0 0.0
        %899 = vmatpush.msra.mxu0 %v878
        %900 = vmatmul.f32.gmra.mxu0 %v882
        %v901 = vpop.f32.mrf.mxu0
        %v902 = vadd.f32 0.0, %v901
        %903 = vdwg.mxu0
        %v905 = vsel %vm794, %v852, 0
        %907 = vmatpush.msra.mxu0 0.0
        %908 = vmatpush.msra.mxu0 0.0
        %909 = vmatpush.msra.mxu0 0.0
        %910 = vmatpush.msra.mxu0 0.0
        %911 = vmatpush.msra.mxu0 0.0
        %912 = vmatpush.msra.mxu0 0.0
        %913 = vmatpush.msra.mxu0 0.0
        %914 = vmatpush.msra.mxu0 0.0
        %915 = vmatpush.msra.mxu0 0.0
        %916 = vmatpush.msra.mxu0 0.0
        %917 = vmatpush.msra.mxu0 0.0
        %918 = vmatpush.msra.mxu0 0.0
        %919 = vmatpush.msra.mxu0 0.0
        %920 = vmatpush.msra.mxu0 0.0
        %921 = vmatpush.msra.mxu0 0.0
        %922 = vmatpush.msra.mxu0 %v850
        %923 = vmatmul.f32.gmra.mxu0 %v905
        %v924 = vpop.f32.mrf.mxu0
        %v925 = vadd.f32 %v902, %v924
        %926 = vdwg.mxu0
        %v927 = vld [vmem:[%s8] sm:$0xff]
        %929 = vset.pattern.permute.xlu0 0
        %930 = vperm.xlu0 %929, %v927
        %v931 = vpop.permute.xlu0 %930
        %v933 = vadd.f32 %v925, %v931
        %v934 = vmax.f32 %v933, 0.0
        %s935 = scalar_lea.vmem %s9, 8
        %v936 = vld [vmem:[%s935] sm:$0xff]
        %v938 = vsel %vm687, %v934, 0
        %940 = vmatpush.msra.mxu0 0.0
        %941 = vmatpush.msra.mxu0 0.0
        %942 = vmatpush.msra.mxu0 0.0
        %943 = vmatpush.msra.mxu0 0.0
        %944 = vmatpush.msra.mxu0 0.0
        %945 = vmatpush.msra.mxu0 0.0
        %946 = vmatpush.msra.mxu0 0.0
        %947 = vmatpush.msra.mxu0 0.0
        %948 = vmatpush.msra.mxu0 0.0
        %949 = vmatpush.msra.mxu0 0.0
        %950 = vmatpush.msra.mxu0 0.0
        %951 = vmatpush.msra.mxu0 0.0
        %952 = vmatpush.msra.mxu0 0.0
        %953 = vmatpush.msra.mxu0 0.0
        %954 = vmatpush.msra.mxu0 %v856
        %955 = vmatpush.msra.mxu0 %v855
        %956 = vmatmul.f32.gmra.mxu0 %v938
        %v957 = vpop.f32.mrf.mxu0
        %v958 = vadd.f32 0.0, %v957
        %959 = vdwg.mxu0
        %v960 = vld [vmem:[%s9] sm:$0xff]
        %v962 = vsel %vm794, %v960, 0
        %964 = vmatpush.msra.mxu0 0.0
        %965 = vmatpush.msra.mxu0 0.0
        %966 = vmatpush.msra.mxu0 0.0
        %967 = vmatpush.msra.mxu0 0.0
        %968 = vmatpush.msra.mxu0 0.0
        %969 = vmatpush.msra.mxu0 0.0
        %970 = vmatpush.msra.mxu0 0.0
        %971 = vmatpush.msra.mxu0 0.0
        %972 = vmatpush.msra.mxu0 0.0
        %973 = vmatpush.msra.mxu0 0.0
        %974 = vmatpush.msra.mxu0 0.0
        %975 = vmatpush.msra.mxu0 0.0
        %976 = vmatpush.msra.mxu0 0.0
        %977 = vmatpush.msra.mxu0 0.0
        %978 = vmatpush.msra.mxu0 0.0
        %979 = vmatpush.msra.mxu0 %v958
        %980 = vmatmul.f32.gmra.mxu0 %v962
        %v981 = vpop.f32.mrf.mxu0
        %v982 = vadd.f32 0.0, %v981
        %983 = vdwg.mxu0
        %v985 = vsel %vm794, %v936, 0
        %987 = vmatpush.msra.mxu0 0.0
        %988 = vmatpush.msra.mxu0 0.0
        %989 = vmatpush.msra.mxu0 0.0
        %990 = vmatpush.msra.mxu0 0.0
        %991 = vmatpush.msra.mxu0 0.0
        %992 = vmatpush.msra.mxu0 0.0
        %993 = vmatpush.msra.mxu0 0.0
        %994 = vmatpush.msra.mxu0 0.0
        %995 = vmatpush.msra.mxu0 0.0
        %996 = vmatpush.msra.mxu0 0.0
        %997 = vmatpush.msra.mxu0 0.0
        %998 = vmatpush.msra.mxu0 0.0
        %999 = vmatpush.msra.mxu0 0.0
        %1000 = vmatpush.msra.mxu0 0.0
        %1001 = vmatpush.msra.mxu0 0.0
        %1002 = vmatpush.msra.mxu0 %v934
        %1003 = vmatmul.f32.gmra.mxu0 %v985
        %v1004 = vpop.f32.mrf.mxu0
        %v1005 = vadd.f32 %v982, %v1004
        %1006 = vdwg.mxu0
        %v1007 = vld [vmem:[%s10] sm:$0xff]
        %1009 = vset.pattern.permute.xlu0 0
        %1010 = vperm.xlu0 %1009, %v1007
        %v1011 = vpop.permute.xlu0 %1010
        %v1013 = vadd.f32 %v1005, %v1011
        %v1014 = vmax.f32 %v1013, 0.0
        %v1015 = vadd.f32 %v1014, %v850
        %v1016 = vmax.f32 %v1015, 0.0
        %v1017 = vld [vmem:[%s15] sm:$0xff]
        %v1018 = vld [vmem:[%s15 + $0x8] sm:$0xff]
        %v1019 = vld [vmem:[%s16] sm:$0xff]
        %v1020 = vld [vmem:[%s16 + $0x8] sm:$0xff]
        %1022 = vset.pattern.permute.xlu0 0
        %1023 = vperm.xlu0 %1022, %v1019
        %v1024 = vpop.permute.xlu0 %1023
        %1027 = vset.pattern.permute.xlu0 0
        %1028 = vperm.xlu0 %1027, %v1020
        %v1029 = vpop.permute.xlu0 %1028
        %v1032 = vsel %vm794, %v1017, 0
        %v1035 = vsel %vm794, %v1018, 0
        %1037 = vmatpush.msra.mxu0 0.0
        %1038 = vmatpush.msra.mxu0 0.0
        %1039 = vmatpush.msra.mxu0 0.0
        %1040 = vmatpush.msra.mxu0 0.0
        %1041 = vmatpush.msra.mxu0 0.0
        %1042 = vmatpush.msra.mxu0 0.0
        %1043 = vmatpush.msra.mxu0 0.0
        %1044 = vmatpush.msra.mxu0 0.0
        %1045 = vmatpush.msra.mxu0 0.0
        %1046 = vmatpush.msra.mxu0 0.0
        %1047 = vmatpush.msra.mxu0 0.0
        %1048 = vmatpush.msra.mxu0 0.0
        %1049 = vmatpush.msra.mxu0 0.0
        %1050 = vmatpush.msra.mxu0 0.0
        %1051 = vmatpush.msra.mxu0 0.0
        %1052 = vmatpush.msra.mxu0 %v1016
        %1053 = vmatmul.f32.gmra.mxu0 %v1032
        %v1054 = vpop.f32.mrf.mxu0
        %v1055 = vadd.f32 %v1024, %v1054
        %1056 = vmatmul.f32.gmra.mxu0 %v1035
        %v1057 = vpop.f32.mrf.mxu0
        %v1058 = vadd.f32 %v1029, %v1057
        %1059 = vdwg.mxu0
        %s1060 = scalar_lea.vmem %s11, 16
        %v1061 = vld [vmem:[%s1060] sm:$0xff]
        %v1062 = vld [vmem:[%s1060 + $0x8] sm:$0xff]
        %vm1063 = vcmp.eq.s32.totalorder %v681, 4
        %vm1064 = vcmp.eq.s32.totalorder %v682, 4
        %v1065 = vsel %vm1063, 1.0, 0.0
        %v1066 = vsel %vm1064, 1.0, 0.0
        %v1068 = vsel %vm687, %v1016, 0
        %1070 = vmatpush.msra.mxu0 0.0
        %1071 = vmatpush.msra.mxu0 0.0
        %1072 = vmatpush.msra.mxu0 0.0
        %1073 = vmatpush.msra.mxu0 0.0
        %1074 = vmatpush.msra.mxu0 0.0
        %1075 = vmatpush.msra.mxu0 0.0
        %1076 = vmatpush.msra.mxu0 0.0
        %1077 = vmatpush.msra.mxu0 0.0
        %1078 = vmatpush.msra.mxu0 0.0
        %1079 = vmatpush.msra.mxu0 0.0
        %1080 = vmatpush.msra.mxu0 0.0
        %1081 = vmatpush.msra.mxu0 0.0
        %1082 = vmatpush.msra.mxu0 0.0
        %1083 = vmatpush.msra.mxu0 0.0
        %1084 = vmatpush.msra.mxu0 %v1066
        %1085 = vmatpush.msra.mxu0 %v1065
        %1086 = vmatmul.f32.gmra.mxu0 %v1068
        %v1087 = vpop.f32.mrf.mxu0
        %v1088 = vadd.f32 0.0, %v1087
        %1089 = vdwg.mxu0
        %v1090 = vld [vmem:[%s11] sm:$0xff]
        %v1091 = vld [vmem:[%s11 + $0x8] sm:$0xff]
        %v1093 = vsel %vm794, %v1090, 0
        %v1096 = vsel %vm794, %v1091, 0
        %1098 = vmatpush.msra.mxu0 0.0
        %1099 = vmatpush.msra.mxu0 0.0
        %1100 = vmatpush.msra.mxu0 0.0
        %1101 = vmatpush.msra.mxu0 0.0
        %1102 = vmatpush.msra.mxu0 0.0
        %1103 = vmatpush.msra.mxu0 0.0
        %1104 = vmatpush.msra.mxu0 0.0
        %1105 = vmatpush.msra.mxu0 0.0
        %1106 = vmatpush.msra.mxu0 0.0
        %1107 = vmatpush.msra.mxu0 0.0
        %1108 = vmatpush.msra.mxu0 0.0
        %1109 = vmatpush.msra.mxu0 0.0
        %1110 = vmatpush.msra.mxu0 0.0
        %1111 = vmatpush.msra.mxu0 0.0
        %1112 = vmatpush.msra.mxu0 0.0
        %1113 = vmatpush.msra.mxu0 %v1088
        %1114 = vmatmul.f32.gmra.mxu0 %v1093
        %v1115 = vpop.f32.mrf.mxu0
        %v1116 = vadd.f32 0.0, %v1115
        %1117 = vmatmul.f32.gmra.mxu0 %v1096
        %v1118 = vpop.f32.mrf.mxu0
        %v1119 = vadd.f32 0.0, %v1118
        %1120 = vdwg.mxu0
        %v1122 = vsel %vm794, %v1061, 0
        %v1125 = vsel %vm794, %v1062, 0
        %1127 = vmatpush.msra.mxu0 0.0
        %1128 = vmatpush.msra.mxu0 0.0
        %1129 = vmatpush.msra.mxu0 0.0
        %1130 = vmatpush.msra.mxu0 0.0
        %1131 = vmatpush.msra.mxu0 0.0
        %1132 = vmatpush.msra.mxu0 0.0
        %1133 = vmatpush.msra.mxu0 0.0
        %1134 = vmatpush.msra.mxu0 0.0
        %1135 = vmatpush.msra.mxu0 0.0
        %1136 = vmatpush.msra.mxu0 0.0
        %1137 = vmatpush.msra.mxu0 0.0
        %1138 = vmatpush.msra.mxu0 0.0
        %1139 = vmatpush.msra.mxu0 0.0
        %1140 = vmatpush.msra.mxu0 0.0
        %1141 = vmatpush.msra.mxu0 0.0
        %1142 = vmatpush.msra.mxu0 %v1016
        %1143 = vmatmul.f32.gmra.mxu0 %v1122
        %v1144 = vpop.f32.mrf.mxu0
        %v1145 = vadd.f32 %v1116, %v1144
        %1146 = vmatmul.f32.gmra.mxu0 %v1125
        %v1147 = vpop.f32.mrf.mxu0
        %v1148 = vadd.f32 %v1119, %v1147
        %1149 = vdwg.mxu0
        %v1150 = vld [vmem:[%s12] sm:$0xff]
        %v1151 = vld [vmem:[%s12 + $0x8] sm:$0xff]
        %1153 = vset.pattern.permute.xlu0 0
        %1154 = vperm.xlu0 %1153, %v1150
        %v1155 = vpop.permute.xlu0 %1154
        %1158 = vset.pattern.permute.xlu0 0
        %1159 = vperm.xlu0 %1158, %v1151
        %v1160 = vpop.permute.xlu0 %1159
        %v1162 = vadd.f32 %v1145, %v1155
        %v1163 = vadd.f32 %v1148, %v1160
        %v1164 = vmax.f32 %v1162, 0.0
        %v1165 = vmax.f32 %v1163, 0.0
        %s1166 = scalar_lea.vmem %s13, 16
        %v1167 = vld [vmem:[%s1166] sm:$0xff]
        %v1168 = vld [vmem:[%s1166 + $0x8] sm:$0xff]
        %v1170 = vsel %vm687, %v1164, 0
        %v1173 = vsel %vm687, %v1165, 0
        %1175 = vmatpush.msra.mxu0 0.0
        %1176 = vmatpush.msra.mxu0 0.0
        %1177 = vmatpush.msra.mxu0 0.0
        %1178 = vmatpush.msra.mxu0 0.0
        %1179 = vmatpush.msra.mxu0 0.0
        %1180 = vmatpush.msra.mxu0 0.0
        %1181 = vmatpush.msra.mxu0 0.0
        %1182 = vmatpush.msra.mxu0 0.0
        %1183 = vmatpush.msra.mxu0 0.0
        %1184 = vmatpush.msra.mxu0 0.0
        %1185 = vmatpush.msra.mxu0 0.0
        %1186 = vmatpush.msra.mxu0 0.0
        %1187 = vmatpush.msra.mxu0 0.0
        %1188 = vmatpush.msra.mxu0 0.0
        %1189 = vmatpush.msra.mxu0 %v1066
        %1190 = vmatpush.msra.mxu0 %v1065
        %1191 = vmatmul.f32.gmra.mxu0 %v1170
        %v1192 = vpop.f32.mrf.mxu0
        %v1193 = vadd.f32 0.0, %v1192
        %1194 = vmatmul.f32.gmra.mxu0 %v1173
        %v1195 = vpop.f32.mrf.mxu0
        %v1196 = vadd.f32 0.0, %v1195
        %1197 = vdwg.mxu0
        %v1198 = vld [vmem:[%s13] sm:$0xff]
        %v1199 = vld [vmem:[%s13 + $0x8] sm:$0xff]
        %v1201 = vsel %vm687, %v1198, 0
        %v1204 = vsel %vm687, %v1199, 0
        %1206 = vmatpush.msra.mxu0 0.0
        %1207 = vmatpush.msra.mxu0 0.0
        %1208 = vmatpush.msra.mxu0 0.0
        %1209 = vmatpush.msra.mxu0 0.0
        %1210 = vmatpush.msra.mxu0 0.0
        %1211 = vmatpush.msra.mxu0 0.0
        %1212 = vmatpush.msra.mxu0 0.0
        %1213 = vmatpush.msra.mxu0 0.0
        %1214 = vmatpush.msra.mxu0 0.0
        %1215 = vmatpush.msra.mxu0 0.0
        %1216 = vmatpush.msra.mxu0 0.0
        %1217 = vmatpush.msra.mxu0 0.0
        %1218 = vmatpush.msra.mxu0 0.0
        %1219 = vmatpush.msra.mxu0 0.0
        %1220 = vmatpush.msra.mxu0 %v1196
        %1221 = vmatpush.msra.mxu0 %v1193
        %1222 = vmatmul.f32.gmra.mxu0 %v1201
        %v1223 = vpop.f32.mrf.mxu0
        %v1224 = vadd.f32 0.0, %v1223
        %1225 = vmatmul.f32.gmra.mxu0 %v1204
        %v1226 = vpop.f32.mrf.mxu0
        %v1227 = vadd.f32 0.0, %v1226
        %1228 = vdwg.mxu0
        %v1230 = vsel %vm687, %v1167, 0
        %v1233 = vsel %vm687, %v1168, 0
        %1235 = vmatpush.msra.mxu0 0.0
        %1236 = vmatpush.msra.mxu0 0.0
        %1237 = vmatpush.msra.mxu0 0.0
        %1238 = vmatpush.msra.mxu0 0.0
        %1239 = vmatpush.msra.mxu0 0.0
        %1240 = vmatpush.msra.mxu0 0.0
        %1241 = vmatpush.msra.mxu0 0.0
        %1242 = vmatpush.msra.mxu0 0.0
        %1243 = vmatpush.msra.mxu0 0.0
        %1244 = vmatpush.msra.mxu0 0.0
        %1245 = vmatpush.msra.mxu0 0.0
        %1246 = vmatpush.msra.mxu0 0.0
        %1247 = vmatpush.msra.mxu0 0.0
        %1248 = vmatpush.msra.mxu0 0.0
        %1249 = vmatpush.msra.mxu0 %v1165
        %1250 = vmatpush.msra.mxu0 %v1164
        %1251 = vmatmul.f32.gmra.mxu0 %v1230
        %v1252 = vpop.f32.mrf.mxu0
        %v1253 = vadd.f32 %v1224, %v1252
        %1254 = vmatmul.f32.gmra.mxu0 %v1233
        %v1255 = vpop.f32.mrf.mxu0
        %v1256 = vadd.f32 %v1227, %v1255
        %1257 = vdwg.mxu0
        %v1258 = vld [vmem:[%s14] sm:$0xff]
        %v1259 = vld [vmem:[%s14 + $0x8] sm:$0xff]
        %1261 = vset.pattern.permute.xlu0 0
        %1262 = vperm.xlu0 %1261, %v1258
        %v1263 = vpop.permute.xlu0 %1262
        %1266 = vset.pattern.permute.xlu0 0
        %1267 = vperm.xlu0 %1266, %v1259
        %v1268 = vpop.permute.xlu0 %1267
        %v1270 = vadd.f32 %v1253, %v1263
        %v1271 = vadd.f32 %v1256, %v1268
        %v1272 = vmax.f32 %v1270, 0.0
        %v1273 = vmax.f32 %v1271, 0.0
        %v1274 = vadd.f32 %v1272, %v1055
        %v1275 = vadd.f32 %v1273, %v1058
        %v1276 = vmax.f32 %v1274, 0.0
        %v1277 = vmax.f32 %v1275, 0.0
        %1278 = vst.msk [vmem:[%s621] sm:$0xff] %vm687, %v1276
        %1279 = vst.msk [vmem:[%s621 + $0x8] sm:$0xff] %vm687, %v1277
        %v1280 = vld [vmem:[%s17] sm:$0xff]
        %v1281 = vld [vmem:[%s17 + $0x8] sm:$0xff]
        %v1282 = vld [vmem:[%s18] sm:$0x1]
        %v1284 = vperm.slane %v1282, 0
        %v1287 = vsel %vm687, %v1276, 0
        %v1290 = vsel %vm687, %v1277, 0
        %1292 = vmatpush.msra.mxu0 0.0
        %1293 = vmatpush.msra.mxu0 0.0
        %1294 = vmatpush.msra.mxu0 0.0
        %1295 = vmatpush.msra.mxu0 0.0
        %1296 = vmatpush.msra.mxu0 0.0
        %1297 = vmatpush.msra.mxu0 0.0
        %1298 = vmatpush.msra.mxu0 0.0
        %1299 = vmatpush.msra.mxu0 0.0
        %1300 = vmatpush.msra.mxu0 0.0
        %1301 = vmatpush.msra.mxu0 0.0
        %1302 = vmatpush.msra.mxu0 0.0
        %1303 = vmatpush.msra.mxu0 0.0
        %1304 = vmatpush.msra.mxu0 0.0
        %1305 = vmatpush.msra.mxu0 0.0
        %1306 = vmatpush.msra.mxu0 %v1281
        %1307 = vmatpush.msra.mxu0 %v1280
        %1308 = vmatmul.f32.gmra.mxu0 %v1287
        %v1309 = vpop.f32.mrf.mxu0
        %v1310 = vadd.f32 %v1284, %v1309
        %1311 = vmatmul.f32.gmra.mxu0 %v1290
        %v1312 = vpop.f32.mrf.mxu0
        %v1313 = vadd.f32 %v1284, %v1312
        %1314 = vdwg.mxu0
        %1315 = vst.msk [vmem:[%s637] sm:$0xff] %vm794, %v1310
        %1316 = vst.msk [vmem:[%s637 + $0x8] sm:$0xff] %vm794, %v1313
        %s1317 = sand.u32 %s447, 1
        %s1318 = scalar_lea.sflag [#allocation3], %s1317
        %s1319 = sand.u32 %s447, 1
        %s1320 = smul.addr %s1319, 16
        %s1321 = scalar_lea.vmem [#allocation2], %s1320
        %p1322 = scmp.lt.s32.totalorder %s35, 1
        %s1323 = scalar_select %p1322, %s35, 1
        %s1324 = smul.addr %s1323, 2
        %s1325 = smul.addr %s1324, 8
        %s1326 = scalar_lea.vmem %s20, %s1325
        // Predicated region
        $region97: #{tpu_custom_call.1} parent=95 // pred_check
          %p1327 = pneg %p457
        $region98: #{tpu_custom_call.1} parent=95 // pred_check_branch
          %1329 = sbr.rel (%p1327) target = $region100
        $region99: #{tpu_custom_call.1} parent=95 // pred_region
          %1331 = vsyncadd %s1318, 0
          %s1332 = smul.addr %s35, 2
          %s1333 = smul.addr %s1332, 8
          %s1334 = scalar_lea.hbm %s19, %s1333
          %s1335 = sshll.u32 %s1321, 4
          %s1336 = int_to_ptr.vmem [resolvable:$true] %s1335
          %s1337 = sshll.u32 %s1334, 4
          %s1338 = int_to_ptr.hbm [resolvable:$true] %s1337
          %1343 = dma.vmem_to_hbm [thread:$0]  %s1336, 256, %s1338, %s1318, 128, 128, 8
        $region100: #{tpu_custom_call.1} parent=95 // pred_fallthru
          _
        // Predicated region
        $region101: #{tpu_custom_call.1} parent=95 // pred_check
          %p1344 = pneg %p483
        $region102: #{tpu_custom_call.1} parent=95 // pred_check_branch
          %1346 = sbr.rel (%p1344) target = $region104
        $region103: #{tpu_custom_call.1} parent=95 // pred_region
          _
        $region104: #{tpu_custom_call.1} parent=95 // pred_fallthru
          _
      $region96: #{tpu_custom_call.1} parent=5 // pred_fallthru
        _
      %p1347 = scmp.le.s32.totalorder 2, %s30
      // Predicated region
      $region105: #{tpu_custom_call.1} parent=5 // pred_check
        %p1348 = pneg %p1347
      $region106: #{tpu_custom_call.1} parent=5 // pred_check_branch
        %1350 = sbr.rel (%p1348) target = $region108
      $region107: #{tpu_custom_call.1} parent=5 // pred_region
        %s1351 = ssub.s32 %s30, 2
        // Predicated region
        $region109: #{tpu_custom_call.1} parent=107 // pred_check
          %p1352 = pneg %p463
        $region110: #{tpu_custom_call.1} parent=107 // pred_check_branch
          %1354 = sbr.rel (%p1352) target = $region112
        $region111: #{tpu_custom_call.1} parent=107 // pred_region
          %s1355 = sand.u32 %s448, 1
          %s1356 = scalar_lea.sflag [#allocation3], %s1355
          %s1357 = sand.u32 %s448, 1
          %s1358 = smul.addr %s1357, 16
          %s1359 = scalar_lea.vmem [#allocation2], %s1358
          %1361 = dma.done %s1356, 256
        $region112: #{tpu_custom_call.1} parent=107 // pred_fallthru
          _
        // Predicated region
        $region113: #{tpu_custom_call.1} parent=107 // pred_check
          %p1362 = pneg %p489
        $region114: #{tpu_custom_call.1} parent=107 // pred_check_branch
          %1364 = sbr.rel (%p1362) target = $region116
        $region115: #{tpu_custom_call.1} parent=107 // pred_region
          %p1365 = scmp.lt.s32.totalorder %s36, 1
          %s1366 = scalar_select %p1365, %s36, 1
          %s1367 = smul.addr %s1366, 2
          %s1368 = smul.addr %s1367, 8
          %s1369 = scalar_lea.vmem %s20, %s1368
        $region116: #{tpu_custom_call.1} parent=107 // pred_fallthru
          _
      $region108: #{tpu_custom_call.1} parent=5 // pred_fallthru
        _
    $region6: #{tpu_custom_call.1} parent=1 // loop_footer
      %s34 = sadd.s32 1, %s30
    $region7: #{tpu_custom_call.1} parent=1 // loop_footer_branch
      %29 = sbr.rel target = $region3
    $region8: #{tpu_custom_call.1} parent=1 // loop_exit
      _
    %1370 = vsyncpa [#allocation3], 1
    %s1371 = scalar_lea.sflag [#allocation3], 1
    %1372 = vsyncpa %s1371, 1

</llo_original>
